<compile_context>
chip_gen: v7x
topology: tpu7x:2x2x1
jax: 0.10.0
libtpu: 0.0.40
codegen_flags: <defaults>
</compile_context>

<pallas_src>
import functools

import jax
import jax.numpy as jnp
from jax import lax
from jax.experimental import pallas as pl
from jax.experimental.pallas import tpu as pltpu


def _conv_kernel(x_ref, k_ref, o_ref, *, kh, kw, kt, oh, ow):
    """One grid step: (H, W, bt) image slab -> (kt, OH, OW, bt) output channels.

    x_ref : (H, W, bt)        VMEM  (batch on the 128-lane axis)
    k_ref : (K*kh*kw,)        SMEM  (flat scalar weight table)
    o_ref : (kt, OH, OW, bt)  VMEM
    """
    taps = kh * kw
    k0 = pl.program_id(1) * kt          # first output channel of this block

    accs = [None] * kt

    # Tap-outer / channel-inner ordering: each shifted tap slab is built once,
    # reused by every output channel of this block, then dropped.  Only
    # (kt accumulators + 1 tap) slabs are ever live -- the kh*kw slab set is
    # never materialized.  The dh slice is a major-axis slice (free); the dw
    # slice is a small sublane-offset load handled by Mosaic.
    for dh in range(kh):
        for dw in range(kw):
            t = dh * kw + dw
            tap = x_ref[dh:dh + oh, dw:dw + ow, :]          # (OH, OW, bt)
            for kk in range(kt):
                w = k_ref[(k0 + kk) * taps + t]             # scalar from SMEM
                contrib = tap * w                           # VPU mul, batch-dense lanes
                accs[kk] = contrib if accs[kk] is None else accs[kk] + contrib

    # Per-channel stores (no jnp.stack epilogue): each accumulator's vregs are
    # released as soon as its lane-dense block store is issued.
    for kk in range(kt):
        o_ref[kk, :, :, :] = accs[kk].astype(o_ref.dtype)


def _largest_divisor_leq(n, cap):
    for d in range(min(n, cap), 0, -1):
        if n % d == 0:
            return d
    return 1


def conv2d_pallas(x, kernels):
    """Pallas equivalent of Conv2dFunction.forward."""
    B, H, W = x.shape
    K, kh, kw = kernels.shape
    assert kh == kw, "kernel must be square"
    OH, OW = H - kh + 1, W - kw + 1
    assert OH > 0 and OW > 0

    # ---- channel tile: caps the number of simultaneously-live accumulators.
    kt = _largest_divisor_leq(K, 8)

    # ---- batch tile (lane axis), sized from a VMEM budget ------------------
    VMEM_BUDGET = 20 * 1024 * 1024      # per-step working-set target (bytes)

    def step_bytes(bt_, kt_):
        in_blk = H * W * bt_ * 4
        out_blk = kt_ * OH * OW * bt_ * 4
        live = (kt_ + 1) * OH * OW * bt_ * 4   # kt accumulators + current tap
        return 2 * in_blk + 2 * out_blk + live  # in/out are double-buffered

    if B <= 256:
        # Small batch: a single full-width lane block (block dim == full array
        # dim is legal), no batch padding -> exact HBM traffic.
        bt = B
    else:
        bt = 128
        while bt * 2 <= B and step_bytes(bt * 2, kt) <= VMEM_BUDGET:
            bt *= 2
        # Keep >= 2 batch blocks so the "parallel" axis can spread across both
        # TensorCores on megacore parts (v7x).
        while pl.cdiv(B, bt) < 2 and bt > 128:
            bt //= 2

    Bp = pl.cdiv(B, bt) * bt
    nb = Bp // bt

    # If the batch axis gives only a single grid step, split the channel axis
    # so megacore parts still get >= 2 parallel steps.
    if nb == 1 and K > 1 and kt == K:
        kt = _largest_divisor_leq(K, max(1, K // 2))
    nk = K // kt

    # ---- batch-on-lanes layout: (B, H, W) -> (H, W, Bp) ---------------------
    x_t = jnp.transpose(x.astype(jnp.float32), (1, 2, 0))
    if Bp != B:
        x_t = jnp.pad(x_t, ((0, 0), (0, 0), (0, Bp - B)))

    # 1-D SMEM weight table (avoids multi-D SMEM padding).
    k_flat = kernels.reshape(-1).astype(jnp.float32)

    kernel_fn = functools.partial(_conv_kernel, kh=kh, kw=kw, kt=kt, oh=OH, ow=OW)

    out_t = pl.pallas_call(
        kernel_fn,
        out_shape=jax.ShapeDtypeStruct((K, OH, OW, Bp), jnp.float32),
        grid=(nb, nk),
        in_specs=[
            pl.BlockSpec((H, W, bt), lambda b, k: (0, 0, b)),
            pl.BlockSpec(memory_space=pltpu.MemorySpace.SMEM),
        ],
        out_specs=pl.BlockSpec((kt, OH, OW, bt), lambda b, k: (k, 0, 0, b)),
        compiler_params=pltpu.CompilerParams(
            dimension_semantics=("parallel", "parallel"),
            vmem_limit_bytes=48 * 1024 * 1024,
        ),
    )(x_t, k_flat)

    if Bp != B:
        out_t = out_t[..., :B]
    # (K, OH, OW, B) -> (B, K, OH, OW)
    return jnp.transpose(out_t, (3, 0, 1, 2))


def init_kernels(key, kernel_num, kernel_size):
    """Deterministic analogue of nn.init.normal_(mean=0, std=1/kernel_size**2)."""
    std = 1.0 / (kernel_size ** 2)
    return std * jax.random.normal(
        key, (kernel_num, kernel_size, kernel_size), dtype=jnp.float32
    )


def conv2d_reference(x, kernels):
    """Plain-JAX reference (valid cross-correlation)."""
    return lax.conv_general_dilated(
        x[:, None, :, :],          # (B, 1, H, W)
        kernels[:, None, :, :],    # (K, 1, kh, kw)
        window_strides=(1, 1),
        padding="VALID",
    )                              # (B, K, OH, OW)


if __name__ == "__main__":
    # Small shapes consistent with the module's forward: batch=2, H=W=16,
    # kernel_num=4, kernel_size=3.
    B, H, W = 2, 16, 16
    KERNEL_NUM, KERNEL_SIZE = 4, 3

    key = jax.random.PRNGKey(0)
    kx, kk = jax.random.split(key)

    x = jax.random.normal(kx, (B, H, W), dtype=jnp.float32)
    kernels = init_kernels(kk, KERNEL_NUM, KERNEL_SIZE)

    out = conv2d_pallas(x, kernels)
    out = jax.block_until_ready(out)

    ref = conv2d_reference(x, kernels)
    assert out.shape == (B, KERNEL_NUM, H - KERNEL_SIZE + 1, W - KERNEL_SIZE + 1)
    assert jnp.allclose(out, ref, rtol=1e-5, atol=1e-5), "mismatch vs reference"

    print("KERNEL_OK")
</pallas_src>

<mosaic_0001>
module attributes {stable_mosaic.version = 11 : i64} {
  func.func @_conv_kernel(%arg0: i32, %arg1: i32, %arg2: memref<16x16x2xf32, #tpu.memory_space<vmem>>, %arg3: memref<36xf32, #tpu.memory_space<smem>>, %arg4: memref<2x14x14x2xf32, #tpu.memory_space<vmem>>) attributes {dimension_semantics = [#tpu.dimension_semantics<parallel>, #tpu.dimension_semantics<parallel>], iteration_bounds = array<i64: 1, 2>, scalar_prefetch = 0 : i64, scratch_operands = 0 : i64, tpu.core_type = #tpu.core_type<tc>, window_params = [{transform_indices = @transform_0, window_bounds = array<i64: 16, 16, 2>}, {transform_indices = @transform_1, window_bounds = array<i64: 36>}, {transform_indices = @transform_2, window_bounds = array<i64: 2, 14, 14, 2>}]} {
    %c2_i32 = arith.constant 2 : i32
    %0 = arith.muli %arg1, %c2_i32 : i32
    %c0 = arith.constant 0 : index
    %c0_0 = arith.constant 0 : index
    %c0_1 = arith.constant 0 : index
    %1 = vector.load %arg2[%c0, %c0_0, %c0_1] : memref<16x16x2xf32, #tpu.memory_space<vmem>>, vector<14x14x2xf32>
    %c0_i32 = arith.constant 0 : i32
    %2 = arith.addi %0, %c0_i32 : i32
    %c9_i32 = arith.constant 9 : i32
    %3 = arith.muli %2, %c9_i32 : i32
    %c0_i32_2 = arith.constant 0 : i32
    %4 = arith.addi %3, %c0_i32_2 : i32
    %5 = arith.index_cast %4 : i32 to index
    %6 = memref.load %arg3[%5] : memref<36xf32, #tpu.memory_space<smem>>
    %7 = vector.broadcast %6 : f32 to vector<14x14x2xf32>
    %8 = arith.mulf %1, %7 : vector<14x14x2xf32>
    %c1_i32 = arith.constant 1 : i32
    %9 = arith.addi %0, %c1_i32 : i32
    %c9_i32_3 = arith.constant 9 : i32
    %10 = arith.muli %9, %c9_i32_3 : i32
    %c0_i32_4 = arith.constant 0 : i32
    %11 = arith.addi %10, %c0_i32_4 : i32
    %12 = arith.index_cast %11 : i32 to index
    %13 = memref.load %arg3[%12] : memref<36xf32, #tpu.memory_space<smem>>
    %14 = vector.broadcast %13 : f32 to vector<14x14x2xf32>
    %15 = arith.mulf %1, %14 : vector<14x14x2xf32>
    %c0_5 = arith.constant 0 : index
    %c1 = arith.constant 1 : index
    %c0_6 = arith.constant 0 : index
    %16 = vector.load %arg2[%c0_5, %c1, %c0_6] : memref<16x16x2xf32, #tpu.memory_space<vmem>>, vector<14x14x2xf32>
    %c0_i32_7 = arith.constant 0 : i32
    %17 = arith.addi %0, %c0_i32_7 : i32
    %c9_i32_8 = arith.constant 9 : i32
    %18 = arith.muli %17, %c9_i32_8 : i32
    %c1_i32_9 = arith.constant 1 : i32
    %19 = arith.addi %18, %c1_i32_9 : i32
    %20 = arith.index_cast %19 : i32 to index
    %21 = memref.load %arg3[%20] : memref<36xf32, #tpu.memory_space<smem>>
    %22 = vector.broadcast %21 : f32 to vector<14x14x2xf32>
    %23 = arith.mulf %16, %22 : vector<14x14x2xf32>
    %24 = arith.addf %8, %23 : vector<14x14x2xf32>
    %c1_i32_10 = arith.constant 1 : i32
    %25 = arith.addi %0, %c1_i32_10 : i32
    %c9_i32_11 = arith.constant 9 : i32
    %26 = arith.muli %25, %c9_i32_11 : i32
    %c1_i32_12 = arith.constant 1 : i32
    %27 = arith.addi %26, %c1_i32_12 : i32
    %28 = arith.index_cast %27 : i32 to index
    %29 = memref.load %arg3[%28] : memref<36xf32, #tpu.memory_space<smem>>
    %30 = vector.broadcast %29 : f32 to vector<14x14x2xf32>
    %31 = arith.mulf %16, %30 : vector<14x14x2xf32>
    %32 = arith.addf %15, %31 : vector<14x14x2xf32>
    %c0_13 = arith.constant 0 : index
    %c2 = arith.constant 2 : index
    %c0_14 = arith.constant 0 : index
    %33 = vector.load %arg2[%c0_13, %c2, %c0_14] : memref<16x16x2xf32, #tpu.memory_space<vmem>>, vector<14x14x2xf32>
    %c0_i32_15 = arith.constant 0 : i32
    %34 = arith.addi %0, %c0_i32_15 : i32
    %c9_i32_16 = arith.constant 9 : i32
    %35 = arith.muli %34, %c9_i32_16 : i32
    %c2_i32_17 = arith.constant 2 : i32
    %36 = arith.addi %35, %c2_i32_17 : i32
    %37 = arith.index_cast %36 : i32 to index
    %38 = memref.load %arg3[%37] : memref<36xf32, #tpu.memory_space<smem>>
    %39 = vector.broadcast %38 : f32 to vector<14x14x2xf32>
    %40 = arith.mulf %33, %39 : vector<14x14x2xf32>
    %41 = arith.addf %24, %40 : vector<14x14x2xf32>
    %c1_i32_18 = arith.constant 1 : i32
    %42 = arith.addi %0, %c1_i32_18 : i32
    %c9_i32_19 = arith.constant 9 : i32
    %43 = arith.muli %42, %c9_i32_19 : i32
    %c2_i32_20 = arith.constant 2 : i32
    %44 = arith.addi %43, %c2_i32_20 : i32
    %45 = arith.index_cast %44 : i32 to index
    %46 = memref.load %arg3[%45] : memref<36xf32, #tpu.memory_space<smem>>
    %47 = vector.broadcast %46 : f32 to vector<14x14x2xf32>
    %48 = arith.mulf %33, %47 : vector<14x14x2xf32>
    %49 = arith.addf %32, %48 : vector<14x14x2xf32>
    %c1_21 = arith.constant 1 : index
    %c0_22 = arith.constant 0 : index
    %c0_23 = arith.constant 0 : index
    %50 = vector.load %arg2[%c1_21, %c0_22, %c0_23] : memref<16x16x2xf32, #tpu.memory_space<vmem>>, vector<14x14x2xf32>
    %c0_i32_24 = arith.constant 0 : i32
    %51 = arith.addi %0, %c0_i32_24 : i32
    %c9_i32_25 = arith.constant 9 : i32
    %52 = arith.muli %51, %c9_i32_25 : i32
    %c3_i32 = arith.constant 3 : i32
    %53 = arith.addi %52, %c3_i32 : i32
    %54 = arith.index_cast %53 : i32 to index
    %55 = memref.load %arg3[%54] : memref<36xf32, #tpu.memory_space<smem>>
    %56 = vector.broadcast %55 : f32 to vector<14x14x2xf32>
    %57 = arith.mulf %50, %56 : vector<14x14x2xf32>
    %58 = arith.addf %41, %57 : vector<14x14x2xf32>
    %c1_i32_26 = arith.constant 1 : i32
    %59 = arith.addi %0, %c1_i32_26 : i32
    %c9_i32_27 = arith.constant 9 : i32
    %60 = arith.muli %59, %c9_i32_27 : i32
    %c3_i32_28 = arith.constant 3 : i32
    %61 = arith.addi %60, %c3_i32_28 : i32
    %62 = arith.index_cast %61 : i32 to index
    %63 = memref.load %arg3[%62] : memref<36xf32, #tpu.memory_space<smem>>
    %64 = vector.broadcast %63 : f32 to vector<14x14x2xf32>
    %65 = arith.mulf %50, %64 : vector<14x14x2xf32>
    %66 = arith.addf %49, %65 : vector<14x14x2xf32>
    %c1_29 = arith.constant 1 : index
    %c1_30 = arith.constant 1 : index
    %c0_31 = arith.constant 0 : index
    %67 = vector.load %arg2[%c1_29, %c1_30, %c0_31] : memref<16x16x2xf32, #tpu.memory_space<vmem>>, vector<14x14x2xf32>
    %c0_i32_32 = arith.constant 0 : i32
    %68 = arith.addi %0, %c0_i32_32 : i32
    %c9_i32_33 = arith.constant 9 : i32
    %69 = arith.muli %68, %c9_i32_33 : i32
    %c4_i32 = arith.constant 4 : i32
    %70 = arith.addi %69, %c4_i32 : i32
    %71 = arith.index_cast %70 : i32 to index
    %72 = memref.load %arg3[%71] : memref<36xf32, #tpu.memory_space<smem>>
    %73 = vector.broadcast %72 : f32 to vector<14x14x2xf32>
    %74 = arith.mulf %67, %73 : vector<14x14x2xf32>
    %75 = arith.addf %58, %74 : vector<14x14x2xf32>
    %c1_i32_34 = arith.constant 1 : i32
    %76 = arith.addi %0, %c1_i32_34 : i32
    %c9_i32_35 = arith.constant 9 : i32
    %77 = arith.muli %76, %c9_i32_35 : i32
    %c4_i32_36 = arith.constant 4 : i32
    %78 = arith.addi %77, %c4_i32_36 : i32
    %79 = arith.index_cast %78 : i32 to index
    %80 = memref.load %arg3[%79] : memref<36xf32, #tpu.memory_space<smem>>
    %81 = vector.broadcast %80 : f32 to vector<14x14x2xf32>
    %82 = arith.mulf %67, %81 : vector<14x14x2xf32>
    %83 = arith.addf %66, %82 : vector<14x14x2xf32>
    %c1_37 = arith.constant 1 : index
    %c2_38 = arith.constant 2 : index
    %c0_39 = arith.constant 0 : index
    %84 = vector.load %arg2[%c1_37, %c2_38, %c0_39] : memref<16x16x2xf32, #tpu.memory_space<vmem>>, vector<14x14x2xf32>
    %c0_i32_40 = arith.constant 0 : i32
    %85 = arith.addi %0, %c0_i32_40 : i32
    %c9_i32_41 = arith.constant 9 : i32
    %86 = arith.muli %85, %c9_i32_41 : i32
    %c5_i32 = arith.constant 5 : i32
    %87 = arith.addi %86, %c5_i32 : i32
    %88 = arith.index_cast %87 : i32 to index
    %89 = memref.load %arg3[%88] : memref<36xf32, #tpu.memory_space<smem>>
    %90 = vector.broadcast %89 : f32 to vector<14x14x2xf32>
    %91 = arith.mulf %84, %90 : vector<14x14x2xf32>
    %92 = arith.addf %75, %91 : vector<14x14x2xf32>
    %c1_i32_42 = arith.constant 1 : i32
    %93 = arith.addi %0, %c1_i32_42 : i32
    %c9_i32_43 = arith.constant 9 : i32
    %94 = arith.muli %93, %c9_i32_43 : i32
    %c5_i32_44 = arith.constant 5 : i32
    %95 = arith.addi %94, %c5_i32_44 : i32
    %96 = arith.index_cast %95 : i32 to index
    %97 = memref.load %arg3[%96] : memref<36xf32, #tpu.memory_space<smem>>
    %98 = vector.broadcast %97 : f32 to vector<14x14x2xf32>
    %99 = arith.mulf %84, %98 : vector<14x14x2xf32>
    %100 = arith.addf %83, %99 : vector<14x14x2xf32>
    %c2_45 = arith.constant 2 : index
    %c0_46 = arith.constant 0 : index
    %c0_47 = arith.constant 0 : index
    %101 = vector.load %arg2[%c2_45, %c0_46, %c0_47] : memref<16x16x2xf32, #tpu.memory_space<vmem>>, vector<14x14x2xf32>
    %c0_i32_48 = arith.constant 0 : i32
    %102 = arith.addi %0, %c0_i32_48 : i32
    %c9_i32_49 = arith.constant 9 : i32
    %103 = arith.muli %102, %c9_i32_49 : i32
    %c6_i32 = arith.constant 6 : i32
    %104 = arith.addi %103, %c6_i32 : i32
    %105 = arith.index_cast %104 : i32 to index
    %106 = memref.load %arg3[%105] : memref<36xf32, #tpu.memory_space<smem>>
    %107 = vector.broadcast %106 : f32 to vector<14x14x2xf32>
    %108 = arith.mulf %101, %107 : vector<14x14x2xf32>
    %109 = arith.addf %92, %108 : vector<14x14x2xf32>
    %c1_i32_50 = arith.constant 1 : i32
    %110 = arith.addi %0, %c1_i32_50 : i32
    %c9_i32_51 = arith.constant 9 : i32
    %111 = arith.muli %110, %c9_i32_51 : i32
    %c6_i32_52 = arith.constant 6 : i32
    %112 = arith.addi %111, %c6_i32_52 : i32
    %113 = arith.index_cast %112 : i32 to index
    %114 = memref.load %arg3[%113] : memref<36xf32, #tpu.memory_space<smem>>
    %115 = vector.broadcast %114 : f32 to vector<14x14x2xf32>
    %116 = arith.mulf %101, %115 : vector<14x14x2xf32>
    %117 = arith.addf %100, %116 : vector<14x14x2xf32>
    %c2_53 = arith.constant 2 : index
    %c1_54 = arith.constant 1 : index
    %c0_55 = arith.constant 0 : index
    %118 = vector.load %arg2[%c2_53, %c1_54, %c0_55] : memref<16x16x2xf32, #tpu.memory_space<vmem>>, vector<14x14x2xf32>
    %c0_i32_56 = arith.constant 0 : i32
    %119 = arith.addi %0, %c0_i32_56 : i32
    %c9_i32_57 = arith.constant 9 : i32
    %120 = arith.muli %119, %c9_i32_57 : i32
    %c7_i32 = arith.constant 7 : i32
    %121 = arith.addi %120, %c7_i32 : i32
    %122 = arith.index_cast %121 : i32 to index
    %123 = memref.load %arg3[%122] : memref<36xf32, #tpu.memory_space<smem>>
    %124 = vector.broadcast %123 : f32 to vector<14x14x2xf32>
    %125 = arith.mulf %118, %124 : vector<14x14x2xf32>
    %126 = arith.addf %109, %125 : vector<14x14x2xf32>
    %c1_i32_58 = arith.constant 1 : i32
    %127 = arith.addi %0, %c1_i32_58 : i32
    %c9_i32_59 = arith.constant 9 : i32
    %128 = arith.muli %127, %c9_i32_59 : i32
    %c7_i32_60 = arith.constant 7 : i32
    %129 = arith.addi %128, %c7_i32_60 : i32
    %130 = arith.index_cast %129 : i32 to index
    %131 = memref.load %arg3[%130] : memref<36xf32, #tpu.memory_space<smem>>
    %132 = vector.broadcast %131 : f32 to vector<14x14x2xf32>
    %133 = arith.mulf %118, %132 : vector<14x14x2xf32>
    %134 = arith.addf %117, %133 : vector<14x14x2xf32>
    %c2_61 = arith.constant 2 : index
    %c2_62 = arith.constant 2 : index
    %c0_63 = arith.constant 0 : index
    %135 = vector.load %arg2[%c2_61, %c2_62, %c0_63] : memref<16x16x2xf32, #tpu.memory_space<vmem>>, vector<14x14x2xf32>
    %c0_i32_64 = arith.constant 0 : i32
    %136 = arith.addi %0, %c0_i32_64 : i32
    %c9_i32_65 = arith.constant 9 : i32
    %137 = arith.muli %136, %c9_i32_65 : i32
    %c8_i32 = arith.constant 8 : i32
    %138 = arith.addi %137, %c8_i32 : i32
    %139 = arith.index_cast %138 : i32 to index
    %140 = memref.load %arg3[%139] : memref<36xf32, #tpu.memory_space<smem>>
    %141 = vector.broadcast %140 : f32 to vector<14x14x2xf32>
    %142 = arith.mulf %135, %141 : vector<14x14x2xf32>
    %143 = arith.addf %126, %142 : vector<14x14x2xf32>
    %c1_i32_66 = arith.constant 1 : i32
    %144 = arith.addi %0, %c1_i32_66 : i32
    %c9_i32_67 = arith.constant 9 : i32
    %145 = arith.muli %144, %c9_i32_67 : i32
    %c8_i32_68 = arith.constant 8 : i32
    %146 = arith.addi %145, %c8_i32_68 : i32
    %147 = arith.index_cast %146 : i32 to index
    %148 = memref.load %arg3[%147] : memref<36xf32, #tpu.memory_space<smem>>
    %149 = vector.broadcast %148 : f32 to vector<14x14x2xf32>
    %150 = arith.mulf %135, %149 : vector<14x14x2xf32>
    %151 = arith.addf %134, %150 : vector<14x14x2xf32>
    %c0_69 = arith.constant 0 : index
    %c0_70 = arith.constant 0 : index
    %c0_71 = arith.constant 0 : index
    %c0_72 = arith.constant 0 : index
    %152 = vector.load %arg4[%c0_69, %c0_70, %c0_71, %c0_72] : memref<2x14x14x2xf32, #tpu.memory_space<vmem>>, vector<1x14x14x2xf32>
    %153 = vector.shape_cast %152 : vector<1x14x14x2xf32> to vector<14x14x2xf32>
    %154 = vector.shape_cast %143 : vector<14x14x2xf32> to vector<1x14x14x2xf32>
    tpu.vector_store %arg4[%c0_69, %c0_70, %c0_71, %c0_72], %154 {strides = array<i32>} : memref<2x14x14x2xf32, #tpu.memory_space<vmem>>, vector<1x14x14x2xf32>,
    %c1_73 = arith.constant 1 : index
    %c0_74 = arith.constant 0 : index
    %c0_75 = arith.constant 0 : index
    %c0_76 = arith.constant 0 : index
    %155 = vector.load %arg4[%c1_73, %c0_74, %c0_75, %c0_76] : memref<2x14x14x2xf32, #tpu.memory_space<vmem>>, vector<1x14x14x2xf32>
    %156 = vector.shape_cast %155 : vector<1x14x14x2xf32> to vector<14x14x2xf32>
    %157 = vector.shape_cast %151 : vector<14x14x2xf32> to vector<1x14x14x2xf32>
    tpu.vector_store %arg4[%c1_73, %c0_74, %c0_75, %c0_76], %157 {strides = array<i32>} : memref<2x14x14x2xf32, #tpu.memory_space<vmem>>, vector<1x14x14x2xf32>,
    return
  }
  func.func @transform_0(%arg0: i32, %arg1: i32) -> (i32, i32, i32) {
    %c0_i32 = arith.constant 0 : i32
    %c0_i32_0 = arith.constant 0 : i32
    %c0_i32_1 = arith.constant 0 : i32
    return %c0_i32, %c0_i32_0, %arg0 : i32, i32, i32
  }
  func.func @transform_1(%arg0: i32, %arg1: i32) -> i32 {
    %c0_i32 = arith.constant 0 : i32
    %c0_i32_0 = arith.constant 0 : i32
    return %c0_i32 : i32
  }
  func.func @transform_2(%arg0: i32, %arg1: i32) -> (i32, i32, i32, i32) {
    %c0_i32 = arith.constant 0 : i32
    %c0_i32_0 = arith.constant 0 : i32
    %c0_i32_1 = arith.constant 0 : i32
    return %arg1, %c0_i32, %c0_i32_0, %arg0 : i32, i32, i32, i32
  }
}

</mosaic_0001>

<llo_original>
// kernel: tpu_custom_call.1
$region0: #{tpu_custom_call.1}
  #allocation0 [shape = 'u32[]', space=smem, size = 0x4, offset = 0x4, fixed_abs, tag = 'smem constant byte address 0x4 - core index']
  #allocation1 [shape = 'u32[144,128]{1,0:T(1,128)}', space=vmem, size = 0x12000, scoped, tag = 'internal scratch']
  %s0 = inlined_call_operand.vmem [shape: f32[16,16,2], index: 0, kind: input, shape index: {}]
  %s1 = inlined_call_operand.vmem [shape: f32[36], index: 1, kind: input, shape index: {}]
  %s2 = inlined_call_operand.vmem [shape: f32[4,14,14,2], index: 2, kind: output, shape index: {}]
  %s3 = sld [smem:[#allocation0]]
  $region45: #{tpu_custom_call.1} parent=0
    _
  %s5 = ssub.s32 1, %s3
  %s6 = scalar_select 0, %s5, %s3
  $region1: #{tpu_custom_call.1} parent=0
    #allocation2 [shape = 'u8[512]{0}', space=smem, size = 0x200, scoped, tag = 'input window, operand 1, single buffered']
    #allocation3 [shape = 's32[2]{0}', space=sflag, size = 0x8, scoped, tag = 'scoped memory for tpu_custom_call.1']
    %7 = vsyncpa [#allocation3], 0
    loop: start=0, step=1, limit=4
    $region2: #{tpu_custom_call.1} parent=1 // loop_pre_header
      _
    $region3: #{tpu_custom_call.1} parent=1 // loop_header
      %s9 = sphi 0, %s13
      %p10 = scmp.ge.s32.totalorder %s9, 4
      %s16 = sphi 0, %s28
      %s17 = sphi 0, %s24
      %s18 = sphi 0, %s16
      %s19 = sphi 0, %s17
      %s20 = sphi 0, %s18
      %s21 = sphi 0, %s19
      %s31 = sphi 0, %s33
      %s34 = sphi 0, %s31
      %s35 = sphi 0, %s34
      %s51 = sphi 0, %s35
      %s55 = sphi 0, %s55
      %s57 = sphi 0, %s55
      %s58 = sphi 0, %s57
      %s72 = sphi 0, %s58
      %s80 = sphi 0, %s82
      %s83 = sphi 0, %s80
      %s84 = sphi 0, %s83
      %s100 = sphi 0, %s84
    $region4: #{tpu_custom_call.1} parent=1 // loop_header_branch
      %12 = sbr.rel (%p10) target = $region8
    $region5: #{tpu_custom_call.1} parent=1 // loop_body
      %s14 = ssub.s32 %s9, 1
      %s15 = ssub.s32 %s9, 2
      %s22 = sadd.s32 1, %s17
      %p23 = scmp.ge.s32.totalorder %s22, 2
      %s24 = scalar_select %p23, 0, %s22
      %s25 = sadd.s32 1, %s16
      %s26 = scalar_select %p23, %s25, %s16
      %p27 = scmp.ge.s32.totalorder %s26, 1
      %s28 = scalar_select %p27, 0, %s26
      %s29 = ssub.s32 %s16, %s28
      %p30 = scmp.eq.s32.totalorder %s29, 0
      %s32 = sadd.s32 %s31, 1
      %s33 = scalar_select %p30, %s31, %s32
      %p36 = pneg %p30
      %p37 = scmp.eq.s32.totalorder %s9, 1
      %p38 = por %p36, %p37
      %p39 = scmp.ne.s32.totalorder %s31, %s34
      %p40 = scmp.eq.s32.totalorder %s9, 0
      %p41 = por %p39, %p40
      %p42 = scmp.ne.s32.totalorder %s31, %s34
      %p43 = scmp.eq.s32.totalorder %s14, 1
      %p44 = por %p42, %p43
      %p45 = scmp.ne.s32.totalorder %s34, %s35
      %p46 = scmp.eq.s32.totalorder %s14, 0
      %p47 = por %p45, %p46
      %p48 = scmp.ne.s32.totalorder %s34, %s35
      %p49 = scmp.eq.s32.totalorder %s15, 1
      %p50 = por %p48, %p49
      %p52 = scmp.ne.s32.totalorder %s35, %s51
      %p53 = scmp.eq.s32.totalorder %s15, 0
      %p54 = por %p52, %p53
      %s56 = sadd.s32 %s55, 1
      %p59 = scmp.eq.s32.totalorder %s9, 1
      %p60 = scmp.ne.s32.totalorder %s55, %s57
      %p61 = scmp.eq.s32.totalorder %s9, 0
      %p62 = por %p60, %p61
      %p63 = scmp.ne.s32.totalorder %s55, %s57
      %p64 = scmp.eq.s32.totalorder %s14, 1
      %p65 = por %p63, %p64
      %p66 = scmp.ne.s32.totalorder %s57, %s58
      %p67 = scmp.eq.s32.totalorder %s14, 0
      %p68 = por %p66, %p67
      %p69 = scmp.ne.s32.totalorder %s57, %s58
      %p70 = scmp.eq.s32.totalorder %s15, 1
      %p71 = por %p69, %p70
      %p73 = scmp.ne.s32.totalorder %s58, %s72
      %p74 = scmp.eq.s32.totalorder %s15, 0
      %p75 = por %p73, %p74
      %s76 = ssub.s32 %s17, %s24
      %s77 = ssub.s32 %s16, %s28
      %s78 = sor.u32 %s76, %s77
      %p79 = scmp.eq.s32.totalorder %s78, 0
      %s81 = sadd.s32 %s80, 1
      %s82 = scalar_select %p79, %s80, %s81
      %p85 = pneg %p79
      %p86 = scmp.eq.s32.totalorder %s9, 1
      %p87 = por %p85, %p86
      %p88 = scmp.ne.s32.totalorder %s80, %s83
      %p89 = scmp.eq.s32.totalorder %s9, 0
      %p90 = por %p88, %p89
      %p91 = scmp.ne.s32.totalorder %s80, %s83
      %p92 = scmp.eq.s32.totalorder %s14, 1
      %p93 = por %p91, %p92
      %p94 = scmp.ne.s32.totalorder %s83, %s84
      %p95 = scmp.eq.s32.totalorder %s14, 0
      %p96 = por %p94, %p95
      %p97 = scmp.ne.s32.totalorder %s83, %s84
      %p98 = scmp.eq.s32.totalorder %s15, 1
      %p99 = por %p97, %p98
      %p101 = scmp.ne.s32.totalorder %s84, %s100
      %p102 = scmp.eq.s32.totalorder %s15, 0
      %p103 = por %p101, %p102
      %p104 = scmp.le.s32.totalorder 1, %s9
      %p105 = scmp.lt.s32.totalorder %s9, 3
      %p106 = pnand %p104, %p105
      %p107 = pneg %p106
      // Predicated region
      $region9: #{tpu_custom_call.1} parent=5 // pred_check
        _
      $region10: #{tpu_custom_call.1} parent=5 // pred_check_branch
        %109 = sbr.rel (%p106) target = $region12
      $region11: #{tpu_custom_call.1} parent=5 // pred_region
        %s110 = ssub.s32 %s9, 1
        // Predicated region
        $region13: #{tpu_custom_call.1} parent=11 // pred_check
          %p111 = pneg %p47
        $region14: #{tpu_custom_call.1} parent=11 // pred_check_branch
          %113 = sbr.rel (%p111) target = $region16
        $region15: #{tpu_custom_call.1} parent=11 // pred_region
          %p114 = scmp.lt.s32.totalorder %s18, 0
          %s115 = scalar_select %p114, %s18, 0
          %s116 = smul.addr %s115, 8
          %s117 = scalar_lea.vmem %s0, %s116
        $region16: #{tpu_custom_call.1} parent=11 // pred_fallthru
          _
        // Predicated region
        $region17: #{tpu_custom_call.1} parent=11 // pred_check
          %p118 = pneg %p68
        $region18: #{tpu_custom_call.1} parent=11 // pred_check_branch
          %120 = sbr.rel (%p118) target = $region20
        $region19: #{tpu_custom_call.1} parent=11 // pred_region
          %s122 = ssub.s32 16, 16
          %123 = vsyncadd [#allocation3], %s122
          %s125 = sshll.u32 %s1, 4
          %s126 = int_to_ptr.vmem [resolvable:$true] %s125
          %128 = dma.vmem_to_smem %s126, 16, [#allocation2], [#allocation3]
        $region20: #{tpu_custom_call.1} parent=11 // pred_fallthru
          _
      $region12: #{tpu_custom_call.1} parent=5 // pred_fallthru
        _
      %p129 = scmp.lt.s32.totalorder %s9, 2
      // Predicated region
      $region21: #{tpu_custom_call.1} parent=5 // pred_check
        %p130 = pneg %p129
      $region22: #{tpu_custom_call.1} parent=5 // pred_check_branch
        %132 = sbr.rel (%p130) target = $region24
      $region23: #{tpu_custom_call.1} parent=5 // pred_region
        _
      $region24: #{tpu_custom_call.1} parent=5 // pred_fallthru
        _
      %p133 = scmp.le.s32.totalorder 1, %s9
      %p134 = scmp.lt.s32.totalorder %s9, 3
      %p135 = pnand %p133, %p134
      %p136 = pneg %p135
      // Predicated region
      $region25: #{tpu_custom_call.1} parent=5 // pred_check
        _
      $region26: #{tpu_custom_call.1} parent=5 // pred_check_branch
        %138 = sbr.rel (%p135) target = $region28
      $region27: #{tpu_custom_call.1} parent=5 // pred_region
        %s139 = ssub.s32 %s9, 1
        // Predicated region
        $region29: #{tpu_custom_call.1} parent=27 // pred_check
          %p140 = pneg %p68
        $region30: #{tpu_custom_call.1} parent=27 // pred_check_branch
          %142 = sbr.rel (%p140) target = $region32
        $region31: #{tpu_custom_call.1} parent=27 // pred_region
          %143 = dma.done [#allocation3], 16
        $region32: #{tpu_custom_call.1} parent=27 // pred_fallthru
          _
        %144 = sfence
        %p145 = scmp.lt.s32.totalorder %s18, 0
        %s146 = scalar_select %p145, %s18, 0
        %s147 = smul.addr %s146, 8
        %s148 = scalar_lea.vmem %s0, %s147
        %p149 = pneg %p47
        %p150 = pneg %p44
        %p151 = pneg %p68
        %p152 = pneg %p65
        %p153 = pneg %p96
        %p154 = pneg %p93
        %s155 = smul.u32 2, %s19
        %p156 = scmp.lt.s32.totalorder %s155, 3
        %s157 = scalar_select %p156, %s155, 3
        %p158 = scmp.lt.s32.totalorder %s18, 0
        %s159 = scalar_select %p158, %s18, 0
        %s160 = smul.addr %s157, 28
        %s161 = sadd.s32 %s159, %s160
        %s162 = smul.addr %s161, 8
        %s163 = scalar_lea.vmem %s2, %s162
        %p164 = scmp.lt.s32.totalorder %s18, 0
        %s165 = scalar_select %p164, %s18, 0
        %s166 = smul.addr %s165, 8
        %s167 = scalar_lea.vmem %s0, %s166
        %s168 = smul.u32 2, %s19
        %p169 = scmp.lt.s32.totalorder %s168, 3
        %s170 = scalar_select %p169, %s168, 3
        %p171 = scmp.lt.s32.totalorder %s18, 0
        %s172 = scalar_select %p171, %s18, 0
        %s173 = smul.addr %s170, 28
        %s174 = sadd.s32 %s172, %s173
        %s175 = smul.addr %s174, 8
        %s176 = scalar_lea.vmem %s2, %s175
        %s177 = smul.u32 2, %s19
        %s178 = smul.u32 %s19, 2
        %v179 = vld [vmem:[%s167] sm:$0xff]
        %v180 = vld [vmem:[%s167 + $0x8] sm:$0x3f]
        %v181 = vld [vmem:[%s167 + $0x10] sm:$0xff]
        %v182 = vld [vmem:[%s167 + $0x18] sm:$0x3f]
        %v183 = vld [vmem:[%s167 + $0x20] sm:$0xff]
        %v184 = vld [vmem:[%s167 + $0x28] sm:$0x3f]
        %v185 = vld [vmem:[%s167 + $0x30] sm:$0xff]
        %v186 = vld [vmem:[%s167 + $0x38] sm:$0x3f]
        %v187 = vld [vmem:[%s167 + $0x40] sm:$0xff]
        %v188 = vld [vmem:[%s167 + $0x48] sm:$0x3f]
        %v189 = vld [vmem:[%s167 + $0x50] sm:$0xff]
        %v190 = vld [vmem:[%s167 + $0x58] sm:$0x3f]
        %v191 = vld [vmem:[%s167 + $0x60] sm:$0xff]
        %v192 = vld [vmem:[%s167 + $0x68] sm:$0x3f]
        %v193 = vld [vmem:[%s167 + $0x70] sm:$0xff]
        %v194 = vld [vmem:[%s167 + $0x78] sm:$0x3f]
        %v195 = vld [vmem:[%s167 + $0x80] sm:$0xff]
        %v196 = vld [vmem:[%s167 + $0x88] sm:$0x3f]
        %v197 = vld [vmem:[%s167 + $0x90] sm:$0xff]
        %v198 = vld [vmem:[%s167 + $0x98] sm:$0x3f]
        %v199 = vld [vmem:[%s167 + $0xa0] sm:$0xff]
        %v200 = vld [vmem:[%s167 + $0xa8] sm:$0x3f]
        %v201 = vld [vmem:[%s167 + $0xb0] sm:$0xff]
        %v202 = vld [vmem:[%s167 + $0xb8] sm:$0x3f]
        %v203 = vld [vmem:[%s167 + $0xc0] sm:$0xff]
        %v204 = vld [vmem:[%s167 + $0xc8] sm:$0x3f]
        %v205 = vld [vmem:[%s167 + $0xd0] sm:$0xff]
        %v206 = vld [vmem:[%s167 + $0xd8] sm:$0x3f]
        %s207 = smul.u32 %s19, 18
        %s208 = sld [smem:[#allocation2 + %s207]]
        %v209 = vstv %s208
        %v210 = vmul.f32 %v179, %v209
        %v211 = vmul.f32 %v180, %v209
        %v212 = vmul.f32 %v181, %v209
        %v213 = vmul.f32 %v182, %v209
        %v214 = vmul.f32 %v183, %v209
        %v215 = vmul.f32 %v184, %v209
        %v216 = vmul.f32 %v185, %v209
        %v217 = vmul.f32 %v186, %v209
        %v218 = vmul.f32 %v187, %v209
        %v219 = vmul.f32 %v188, %v209
        %v220 = vmul.f32 %v189, %v209
        %v221 = vmul.f32 %v190, %v209
        %v222 = vmul.f32 %v191, %v209
        %v223 = vmul.f32 %v192, %v209
        %v224 = vmul.f32 %v193, %v209
        %v225 = vmul.f32 %v194, %v209
        %v226 = vmul.f32 %v195, %v209
        %v227 = vmul.f32 %v196, %v209
        %v228 = vmul.f32 %v197, %v209
        %v229 = vmul.f32 %v198, %v209
        %v230 = vmul.f32 %v199, %v209
        %v231 = vmul.f32 %v200, %v209
        %v232 = vmul.f32 %v201, %v209
        %v233 = vmul.f32 %v202, %v209
        %v234 = vmul.f32 %v203, %v209
        %v235 = vmul.f32 %v204, %v209
        %v236 = vmul.f32 %v205, %v209
        %v237 = vmul.f32 %v206, %v209
        %s238 = sadd.s32 %s178, 1
        %s239 = smul.u32 %s238, 9
        %s240 = sld [smem:[#allocation2 + %s239]]
        %v241 = vstv %s240
        %v242 = vmul.f32 %v179, %v241
        %v243 = vmul.f32 %v180, %v241
        %v244 = vmul.f32 %v181, %v241
        %v245 = vmul.f32 %v182, %v241
        %v246 = vmul.f32 %v183, %v241
        %v247 = vmul.f32 %v184, %v241
        %v248 = vmul.f32 %v185, %v241
        %v249 = vmul.f32 %v186, %v241
        %v250 = vmul.f32 %v187, %v241
        %v251 = vmul.f32 %v188, %v241
        %v252 = vmul.f32 %v189, %v241
        %v253 = vmul.f32 %v190, %v241
        %v254 = vmul.f32 %v191, %v241
        %v255 = vmul.f32 %v192, %v241
        %v256 = vmul.f32 %v193, %v241
        %v257 = vmul.f32 %v194, %v241
        %v258 = vmul.f32 %v195, %v241
        %v259 = vmul.f32 %v196, %v241
        %v260 = vmul.f32 %v197, %v241
        %v261 = vmul.f32 %v198, %v241
        %v262 = vmul.f32 %v199, %v241
        %v263 = vmul.f32 %v200, %v241
        %v264 = vmul.f32 %v201, %v241
        %v265 = vmul.f32 %v202, %v241
        %v266 = vmul.f32 %v203, %v241
        %v267 = vmul.f32 %v204, %v241
        %v268 = vmul.f32 %v205, %v241
        %v269 = vmul.f32 %v206, %v241
        %v270 = vld [vmem:[%s167 + $0x1] sm:$0xff]
        %v271 = vld [vmem:[%s167 + $0x9] sm:$0x3f]
        %v272 = vld [vmem:[%s167 + $0x11] sm:$0xff]
        %v273 = vld [vmem:[%s167 + $0x19] sm:$0x3f]
        %v274 = vld [vmem:[%s167 + $0x21] sm:$0xff]
        %v275 = vld [vmem:[%s167 + $0x29] sm:$0x3f]
        %v276 = vld [vmem:[%s167 + $0x31] sm:$0xff]
        %v277 = vld [vmem:[%s167 + $0x39] sm:$0x3f]
        %v278 = vld [vmem:[%s167 + $0x41] sm:$0xff]
        %v279 = vld [vmem:[%s167 + $0x49] sm:$0x3f]
        %v280 = vld [vmem:[%s167 + $0x51] sm:$0xff]
        %v281 = vld [vmem:[%s167 + $0x59] sm:$0x3f]
        %v282 = vld [vmem:[%s167 + $0x61] sm:$0xff]
        %v283 = vld [vmem:[%s167 + $0x69] sm:$0x3f]
        %v284 = vld [vmem:[%s167 + $0x71] sm:$0xff]
        %v285 = vld [vmem:[%s167 + $0x79] sm:$0x3f]
        %v286 = vld [vmem:[%s167 + $0x81] sm:$0xff]
        %v287 = vld [vmem:[%s167 + $0x89] sm:$0x3f]
        %v288 = vld [vmem:[%s167 + $0x91] sm:$0xff]
        %v289 = vld [vmem:[%s167 + $0x99] sm:$0x3f]
        %v290 = vld [vmem:[%s167 + $0xa1] sm:$0xff]
        %v291 = vld [vmem:[%s167 + $0xa9] sm:$0x3f]
        %v292 = vld [vmem:[%s167 + $0xb1] sm:$0xff]
        %v293 = vld [vmem:[%s167 + $0xb9] sm:$0x3f]
        %v294 = vld [vmem:[%s167 + $0xc1] sm:$0xff]
        %v295 = vld [vmem:[%s167 + $0xc9] sm:$0x3f]
        %v296 = vld [vmem:[%s167 + $0xd1] sm:$0xff]
        %v297 = vld [vmem:[%s167 + $0xd9] sm:$0x3f]
        %s298 = sadd.s32 %s207, 1
        %s299 = sld [smem:[#allocation2 + %s298]]
        %v300 = vstv %s299
        %v301 = vmul.f32 %v270, %v300
        %v302 = vmul.f32 %v271, %v300
        %v303 = vmul.f32 %v272, %v300
        %v304 = vmul.f32 %v273, %v300
        %v305 = vmul.f32 %v274, %v300
        %v306 = vmul.f32 %v275, %v300
        %v307 = vmul.f32 %v276, %v300
        %v308 = vmul.f32 %v277, %v300
        %v309 = vmul.f32 %v278, %v300
        %v310 = vmul.f32 %v279, %v300
        %v311 = vmul.f32 %v280, %v300
        %v312 = vmul.f32 %v281, %v300
        %v313 = vmul.f32 %v282, %v300
        %v314 = vmul.f32 %v283, %v300
        %v315 = vmul.f32 %v284, %v300
        %v316 = vmul.f32 %v285, %v300
        %v317 = vmul.f32 %v286, %v300
        %v318 = vmul.f32 %v287, %v300
        %v319 = vmul.f32 %v288, %v300
        %v320 = vmul.f32 %v289, %v300
        %v321 = vmul.f32 %v290, %v300
        %v322 = vmul.f32 %v291, %v300
        %v323 = vmul.f32 %v292, %v300
        %v324 = vmul.f32 %v293, %v300
        %v325 = vmul.f32 %v294, %v300
        %v326 = vmul.f32 %v295, %v300
        %v327 = vmul.f32 %v296, %v300
        %v328 = vmul.f32 %v297, %v300
        %v329 = vadd.f32 %v210, %v301
        %v330 = vadd.f32 %v211, %v302
        %v331 = vadd.f32 %v212, %v303
        %v332 = vadd.f32 %v213, %v304
        %v333 = vadd.f32 %v214, %v305
        %v334 = vadd.f32 %v215, %v306
        %v335 = vadd.f32 %v216, %v307
        %v336 = vadd.f32 %v217, %v308
        %v337 = vadd.f32 %v218, %v309
        %v338 = vadd.f32 %v219, %v310
        %v339 = vadd.f32 %v220, %v311
        %v340 = vadd.f32 %v221, %v312
        %v341 = vadd.f32 %v222, %v313
        %v342 = vadd.f32 %v223, %v314
        %v343 = vadd.f32 %v224, %v315
        %v344 = vadd.f32 %v225, %v316
        %v345 = vadd.f32 %v226, %v317
        %v346 = vadd.f32 %v227, %v318
        %v347 = vadd.f32 %v228, %v319
        %v348 = vadd.f32 %v229, %v320
        %v349 = vadd.f32 %v230, %v321
        %v350 = vadd.f32 %v231, %v322
        %v351 = vadd.f32 %v232, %v323
        %v352 = vadd.f32 %v233, %v324
        %v353 = vadd.f32 %v234, %v325
        %v354 = vadd.f32 %v235, %v326
        %v355 = vadd.f32 %v236, %v327
        %v356 = vadd.f32 %v237, %v328
        %s357 = sadd.s32 %s239, 1
        %s358 = sld [smem:[#allocation2 + %s357]]
        %v359 = vstv %s358
        %v360 = vmul.f32 %v270, %v359
        %v361 = vmul.f32 %v271, %v359
        %v362 = vmul.f32 %v272, %v359
        %v363 = vmul.f32 %v273, %v359
        %v364 = vmul.f32 %v274, %v359
        %v365 = vmul.f32 %v275, %v359
        %v366 = vmul.f32 %v276, %v359
        %v367 = vmul.f32 %v277, %v359
        %v368 = vmul.f32 %v278, %v359
        %v369 = vmul.f32 %v279, %v359
        %v370 = vmul.f32 %v280, %v359
        %v371 = vmul.f32 %v281, %v359
        %v372 = vmul.f32 %v282, %v359
        %v373 = vmul.f32 %v283, %v359
        %v374 = vmul.f32 %v284, %v359
        %v375 = vmul.f32 %v285, %v359
        %v376 = vmul.f32 %v286, %v359
        %v377 = vmul.f32 %v287, %v359
        %v378 = vmul.f32 %v288, %v359
        %v379 = vmul.f32 %v289, %v359
        %v380 = vmul.f32 %v290, %v359
        %v381 = vmul.f32 %v291, %v359
        %v382 = vmul.f32 %v292, %v359
        %v383 = vmul.f32 %v293, %v359
        %v384 = vmul.f32 %v294, %v359
        %v385 = vmul.f32 %v295, %v359
        %v386 = vmul.f32 %v296, %v359
        %v387 = vmul.f32 %v297, %v359
        %v388 = vadd.f32 %v242, %v360
        %v389 = vadd.f32 %v243, %v361
        %v390 = vadd.f32 %v244, %v362
        %v391 = vadd.f32 %v245, %v363
        %v392 = vadd.f32 %v246, %v364
        %v393 = vadd.f32 %v247, %v365
        %v394 = vadd.f32 %v248, %v366
        %v395 = vadd.f32 %v249, %v367
        %v396 = vadd.f32 %v250, %v368
        %v397 = vadd.f32 %v251, %v369
        %v398 = vadd.f32 %v252, %v370
        %v399 = vadd.f32 %v253, %v371
        %v400 = vadd.f32 %v254, %v372
        %v401 = vadd.f32 %v255, %v373
        %v402 = vadd.f32 %v256, %v374
        %v403 = vadd.f32 %v257, %v375
        %v404 = vadd.f32 %v258, %v376
        %v405 = vadd.f32 %v259, %v377
        %v406 = vadd.f32 %v260, %v378
        %v407 = vadd.f32 %v261, %v379
        %v408 = vadd.f32 %v262, %v380
        %v409 = vadd.f32 %v263, %v381
        %v410 = vadd.f32 %v264, %v382
        %v411 = vadd.f32 %v265, %v383
        %v412 = vadd.f32 %v266, %v384
        %v413 = vadd.f32 %v267, %v385
        %v414 = vadd.f32 %v268, %v386
        %v415 = vadd.f32 %v269, %v387
        %v416 = vld [vmem:[%s167 + $0x2] sm:$0xff]
        %v417 = vld [vmem:[%s167 + $0xa] sm:$0x3f]
        %v418 = vld [vmem:[%s167 + $0x12] sm:$0xff]
        %v419 = vld [vmem:[%s167 + $0x1a] sm:$0x3f]
        %v420 = vld [vmem:[%s167 + $0x22] sm:$0xff]
        %v421 = vld [vmem:[%s167 + $0x2a] sm:$0x3f]
        %v422 = vld [vmem:[%s167 + $0x32] sm:$0xff]
        %v423 = vld [vmem:[%s167 + $0x3a] sm:$0x3f]
        %v424 = vld [vmem:[%s167 + $0x42] sm:$0xff]
        %v425 = vld [vmem:[%s167 + $0x4a] sm:$0x3f]
        %v426 = vld [vmem:[%s167 + $0x52] sm:$0xff]
        %v427 = vld [vmem:[%s167 + $0x5a] sm:$0x3f]
        %v428 = vld [vmem:[%s167 + $0x62] sm:$0xff]
        %v429 = vld [vmem:[%s167 + $0x6a] sm:$0x3f]
        %v430 = vld [vmem:[%s167 + $0x72] sm:$0xff]
        %v431 = vld [vmem:[%s167 + $0x7a] sm:$0x3f]
        %v432 = vld [vmem:[%s167 + $0x82] sm:$0xff]
        %v433 = vld [vmem:[%s167 + $0x8a] sm:$0x3f]
        %v434 = vld [vmem:[%s167 + $0x92] sm:$0xff]
        %v435 = vld [vmem:[%s167 + $0x9a] sm:$0x3f]
        %v436 = vld [vmem:[%s167 + $0xa2] sm:$0xff]
        %v437 = vld [vmem:[%s167 + $0xaa] sm:$0x3f]
        %v438 = vld [vmem:[%s167 + $0xb2] sm:$0xff]
        %v439 = vld [vmem:[%s167 + $0xba] sm:$0x3f]
        %v440 = vld [vmem:[%s167 + $0xc2] sm:$0xff]
        %v441 = vld [vmem:[%s167 + $0xca] sm:$0x3f]
        %v442 = vld [vmem:[%s167 + $0xd2] sm:$0xff]
        %v443 = vld [vmem:[%s167 + $0xda] sm:$0x3f]
        %s444 = sadd.s32 %s207, 2
        %s445 = sld [smem:[#allocation2 + %s444]]
        %v446 = vstv %s445
        %v447 = vmul.f32 %v416, %v446
        %v448 = vmul.f32 %v417, %v446
        %v449 = vmul.f32 %v418, %v446
        %v450 = vmul.f32 %v419, %v446
        %v451 = vmul.f32 %v420, %v446
        %v452 = vmul.f32 %v421, %v446
        %v453 = vmul.f32 %v422, %v446
        %v454 = vmul.f32 %v423, %v446
        %v455 = vmul.f32 %v424, %v446
        %v456 = vmul.f32 %v425, %v446
        %v457 = vmul.f32 %v426, %v446
        %v458 = vmul.f32 %v427, %v446
        %v459 = vmul.f32 %v428, %v446
        %v460 = vmul.f32 %v429, %v446
        %v461 = vmul.f32 %v430, %v446
        %v462 = vmul.f32 %v431, %v446
        %v463 = vmul.f32 %v432, %v446
        %v464 = vmul.f32 %v433, %v446
        %v465 = vmul.f32 %v434, %v446
        %v466 = vmul.f32 %v435, %v446
        %v467 = vmul.f32 %v436, %v446
        %v468 = vmul.f32 %v437, %v446
        %v469 = vmul.f32 %v438, %v446
        %v470 = vmul.f32 %v439, %v446
        %v471 = vmul.f32 %v440, %v446
        %v472 = vmul.f32 %v441, %v446
        %v473 = vmul.f32 %v442, %v446
        %v474 = vmul.f32 %v443, %v446
        %v475 = vadd.f32 %v329, %v447
        %v476 = vadd.f32 %v330, %v448
        %v477 = vadd.f32 %v331, %v449
        %v478 = vadd.f32 %v332, %v450
        %v479 = vadd.f32 %v333, %v451
        %v480 = vadd.f32 %v334, %v452
        %v481 = vadd.f32 %v335, %v453
        %v482 = vadd.f32 %v336, %v454
        %v483 = vadd.f32 %v337, %v455
        %v484 = vadd.f32 %v338, %v456
        %v485 = vadd.f32 %v339, %v457
        %v486 = vadd.f32 %v340, %v458
        %v487 = vadd.f32 %v341, %v459
        %v488 = vadd.f32 %v342, %v460
        %v489 = vadd.f32 %v343, %v461
        %v490 = vadd.f32 %v344, %v462
        %v491 = vadd.f32 %v345, %v463
        %v492 = vadd.f32 %v346, %v464
        %v493 = vadd.f32 %v347, %v465
        %v494 = vadd.f32 %v348, %v466
        %v495 = vadd.f32 %v349, %v467
        %v496 = vadd.f32 %v350, %v468
        %v497 = vadd.f32 %v351, %v469
        %v498 = vadd.f32 %v352, %v470
        %v499 = vadd.f32 %v353, %v471
        %v500 = vadd.f32 %v354, %v472
        %v501 = vadd.f32 %v355, %v473
        %v502 = vadd.f32 %v356, %v474
        %s503 = sadd.s32 %s239, 2
        %s504 = sld [smem:[#allocation2 + %s503]]
        %v505 = vstv %s504
        %v506 = vmul.f32 %v416, %v505
        %v507 = vmul.f32 %v417, %v505
        %v508 = vmul.f32 %v418, %v505
        %v509 = vmul.f32 %v419, %v505
        %v510 = vmul.f32 %v420, %v505
        %v511 = vmul.f32 %v421, %v505
        %v512 = vmul.f32 %v422, %v505
        %v513 = vmul.f32 %v423, %v505
        %v514 = vmul.f32 %v424, %v505
        %v515 = vmul.f32 %v425, %v505
        %v516 = vmul.f32 %v426, %v505
        %v517 = vmul.f32 %v427, %v505
        %v518 = vmul.f32 %v428, %v505
        %v519 = vmul.f32 %v429, %v505
        %v520 = vmul.f32 %v430, %v505
        %v521 = vmul.f32 %v431, %v505
        %v522 = vmul.f32 %v432, %v505
        %v523 = vmul.f32 %v433, %v505
        %v524 = vmul.f32 %v434, %v505
        %v525 = vmul.f32 %v435, %v505
        %v526 = vmul.f32 %v436, %v505
        %v527 = vmul.f32 %v437, %v505
        %v528 = vmul.f32 %v438, %v505
        %v529 = vmul.f32 %v439, %v505
        %v530 = vmul.f32 %v440, %v505
        %v531 = vmul.f32 %v441, %v505
        %v532 = vmul.f32 %v442, %v505
        %v533 = vmul.f32 %v443, %v505
        %v534 = vadd.f32 %v388, %v506
        %v535 = vadd.f32 %v389, %v507
        %v536 = vadd.f32 %v390, %v508
        %v537 = vadd.f32 %v391, %v509
        %v538 = vadd.f32 %v392, %v510
        %v539 = vadd.f32 %v393, %v511
        %v540 = vadd.f32 %v394, %v512
        %v541 = vadd.f32 %v395, %v513
        %v542 = vadd.f32 %v396, %v514
        %v543 = vadd.f32 %v397, %v515
        %v544 = vadd.f32 %v398, %v516
        %v545 = vadd.f32 %v399, %v517
        %v546 = vadd.f32 %v400, %v518
        %v547 = vadd.f32 %v401, %v519
        %v548 = vadd.f32 %v402, %v520
        %v549 = vadd.f32 %v403, %v521
        %v550 = vadd.f32 %v404, %v522
        %v551 = vadd.f32 %v405, %v523
        %v552 = vadd.f32 %v406, %v524
        %v553 = vadd.f32 %v407, %v525
        %v554 = vadd.f32 %v408, %v526
        %v555 = vadd.f32 %v409, %v527
        %v556 = vadd.f32 %v410, %v528
        %v557 = vadd.f32 %v411, %v529
        %v558 = vadd.f32 %v412, %v530
        %v559 = vadd.f32 %v413, %v531
        %v560 = vadd.f32 %v414, %v532
        %v561 = vadd.f32 %v415, %v533
        %s562 = scalar_lea.vmem %s167, 16
        %v563 = vld [vmem:[%s562] sm:$0xff]
        %v564 = vld [vmem:[%s562 + $0x8] sm:$0x3f]
        %v565 = vld [vmem:[%s562 + $0x10] sm:$0xff]
        %v566 = vld [vmem:[%s562 + $0x18] sm:$0x3f]
        %v567 = vld [vmem:[%s562 + $0x20] sm:$0xff]
        %v568 = vld [vmem:[%s562 + $0x28] sm:$0x3f]
        %v569 = vld [vmem:[%s562 + $0x30] sm:$0xff]
        %v570 = vld [vmem:[%s562 + $0x38] sm:$0x3f]
        %v571 = vld [vmem:[%s562 + $0x40] sm:$0xff]
        %v572 = vld [vmem:[%s562 + $0x48] sm:$0x3f]
        %v573 = vld [vmem:[%s562 + $0x50] sm:$0xff]
        %v574 = vld [vmem:[%s562 + $0x58] sm:$0x3f]
        %v575 = vld [vmem:[%s562 + $0x60] sm:$0xff]
        %v576 = vld [vmem:[%s562 + $0x68] sm:$0x3f]
        %v577 = vld [vmem:[%s562 + $0x70] sm:$0xff]
        %v578 = vld [vmem:[%s562 + $0x78] sm:$0x3f]
        %v579 = vld [vmem:[%s562 + $0x80] sm:$0xff]
        %v580 = vld [vmem:[%s562 + $0x88] sm:$0x3f]
        %v581 = vld [vmem:[%s562 + $0x90] sm:$0xff]
        %v582 = vld [vmem:[%s562 + $0x98] sm:$0x3f]
        %v583 = vld [vmem:[%s562 + $0xa0] sm:$0xff]
        %v584 = vld [vmem:[%s562 + $0xa8] sm:$0x3f]
        %v585 = vld [vmem:[%s562 + $0xb0] sm:$0xff]
        %v586 = vld [vmem:[%s562 + $0xb8] sm:$0x3f]
        %v587 = vld [vmem:[%s562 + $0xc0] sm:$0xff]
        %v588 = vld [vmem:[%s562 + $0xc8] sm:$0x3f]
        %v589 = vld [vmem:[%s562 + $0xd0] sm:$0xff]
        %v590 = vld [vmem:[%s562 + $0xd8] sm:$0x3f]
        %s591 = sadd.s32 %s207, 3
        %s592 = sld [smem:[#allocation2 + %s591]]
        %v593 = vstv %s592
        %v594 = vmul.f32 %v563, %v593
        %v595 = vmul.f32 %v564, %v593
        %v596 = vmul.f32 %v565, %v593
        %v597 = vmul.f32 %v566, %v593
        %v598 = vmul.f32 %v567, %v593
        %v599 = vmul.f32 %v568, %v593
        %v600 = vmul.f32 %v569, %v593
        %v601 = vmul.f32 %v570, %v593
        %v602 = vmul.f32 %v571, %v593
        %v603 = vmul.f32 %v572, %v593
        %v604 = vmul.f32 %v573, %v593
        %v605 = vmul.f32 %v574, %v593
        %v606 = vmul.f32 %v575, %v593
        %v607 = vmul.f32 %v576, %v593
        %v608 = vmul.f32 %v577, %v593
        %v609 = vmul.f32 %v578, %v593
        %v610 = vmul.f32 %v579, %v593
        %v611 = vmul.f32 %v580, %v593
        %v612 = vmul.f32 %v581, %v593
        %v613 = vmul.f32 %v582, %v593
        %v614 = vmul.f32 %v583, %v593
        %v615 = vmul.f32 %v584, %v593
        %v616 = vmul.f32 %v585, %v593
        %v617 = vmul.f32 %v586, %v593
        %v618 = vmul.f32 %v587, %v593
        %v619 = vmul.f32 %v588, %v593
        %v620 = vmul.f32 %v589, %v593
        %v621 = vmul.f32 %v590, %v593
        %v622 = vadd.f32 %v475, %v594
        %v623 = vadd.f32 %v476, %v595
        %v624 = vadd.f32 %v477, %v596
        %v625 = vadd.f32 %v478, %v597
        %v626 = vadd.f32 %v479, %v598
        %v627 = vadd.f32 %v480, %v599
        %v628 = vadd.f32 %v481, %v600
        %v629 = vadd.f32 %v482, %v601
        %v630 = vadd.f32 %v483, %v602
        %v631 = vadd.f32 %v484, %v603
        %v632 = vadd.f32 %v485, %v604
        %v633 = vadd.f32 %v486, %v605
        %v634 = vadd.f32 %v487, %v606
        %v635 = vadd.f32 %v488, %v607
        %v636 = vadd.f32 %v489, %v608
        %v637 = vadd.f32 %v490, %v609
        %v638 = vadd.f32 %v491, %v610
        %v639 = vadd.f32 %v492, %v611
        %v640 = vadd.f32 %v493, %v612
        %v641 = vadd.f32 %v494, %v613
        %v642 = vadd.f32 %v495, %v614
        %v643 = vadd.f32 %v496, %v615
        %v644 = vadd.f32 %v497, %v616
        %v645 = vadd.f32 %v498, %v617
        %v646 = vadd.f32 %v499, %v618
        %v647 = vadd.f32 %v500, %v619
        %v648 = vadd.f32 %v501, %v620
        %v649 = vadd.f32 %v502, %v621
        %s650 = sadd.s32 %s239, 3
        %s651 = sld [smem:[#allocation2 + %s650]]
        %v652 = vstv %s651
        %v653 = vmul.f32 %v563, %v652
        %v654 = vmul.f32 %v564, %v652
        %v655 = vmul.f32 %v565, %v652
        %v656 = vmul.f32 %v566, %v652
        %v657 = vmul.f32 %v567, %v652
        %v658 = vmul.f32 %v568, %v652
        %v659 = vmul.f32 %v569, %v652
        %v660 = vmul.f32 %v570, %v652
        %v661 = vmul.f32 %v571, %v652
        %v662 = vmul.f32 %v572, %v652
        %v663 = vmul.f32 %v573, %v652
        %v664 = vmul.f32 %v574, %v652
        %v665 = vmul.f32 %v575, %v652
        %v666 = vmul.f32 %v576, %v652
        %v667 = vmul.f32 %v577, %v652
        %v668 = vmul.f32 %v578, %v652
        %v669 = vmul.f32 %v579, %v652
        %v670 = vmul.f32 %v580, %v652
        %v671 = vmul.f32 %v581, %v652
        %v672 = vmul.f32 %v582, %v652
        %v673 = vmul.f32 %v583, %v652
        %v674 = vmul.f32 %v584, %v652
        %v675 = vmul.f32 %v585, %v652
        %v676 = vmul.f32 %v586, %v652
        %v677 = vmul.f32 %v587, %v652
        %v678 = vmul.f32 %v588, %v652
        %v679 = vmul.f32 %v589, %v652
        %v680 = vmul.f32 %v590, %v652
        %v681 = vadd.f32 %v534, %v653
        %v682 = vadd.f32 %v535, %v654
        %v683 = vadd.f32 %v536, %v655
        %v684 = vadd.f32 %v537, %v656
        %v685 = vadd.f32 %v538, %v657
        %v686 = vadd.f32 %v539, %v658
        %v687 = vadd.f32 %v540, %v659
        %v688 = vadd.f32 %v541, %v660
        %v689 = vadd.f32 %v542, %v661
        %v690 = vadd.f32 %v543, %v662
        %v691 = vadd.f32 %v544, %v663
        %v692 = vadd.f32 %v545, %v664
        %v693 = vadd.f32 %v546, %v665
        %v694 = vadd.f32 %v547, %v666
        %v695 = vadd.f32 %v548, %v667
        %v696 = vadd.f32 %v549, %v668
        %v697 = vadd.f32 %v550, %v669
        %v698 = vadd.f32 %v551, %v670
        %v699 = vadd.f32 %v552, %v671
        %v700 = vadd.f32 %v553, %v672
        %v701 = vadd.f32 %v554, %v673
        %v702 = vadd.f32 %v555, %v674
        %v703 = vadd.f32 %v556, %v675
        %v704 = vadd.f32 %v557, %v676
        %v705 = vadd.f32 %v558, %v677
        %v706 = vadd.f32 %v559, %v678
        %v707 = vadd.f32 %v560, %v679
        %v708 = vadd.f32 %v561, %v680
        %v709 = vld [vmem:[%s562 + $0x1] sm:$0xff]
        %v710 = vld [vmem:[%s562 + $0x9] sm:$0x3f]
        %v711 = vld [vmem:[%s562 + $0x11] sm:$0xff]
        %v712 = vld [vmem:[%s562 + $0x19] sm:$0x3f]
        %v713 = vld [vmem:[%s562 + $0x21] sm:$0xff]
        %v714 = vld [vmem:[%s562 + $0x29] sm:$0x3f]
        %v715 = vld [vmem:[%s562 + $0x31] sm:$0xff]
        %v716 = vld [vmem:[%s562 + $0x39] sm:$0x3f]
        %v717 = vld [vmem:[%s562 + $0x41] sm:$0xff]
        %v718 = vld [vmem:[%s562 + $0x49] sm:$0x3f]
        %v719 = vld [vmem:[%s562 + $0x51] sm:$0xff]
        %v720 = vld [vmem:[%s562 + $0x59] sm:$0x3f]
        %v721 = vld [vmem:[%s562 + $0x61] sm:$0xff]
        %v722 = vld [vmem:[%s562 + $0x69] sm:$0x3f]
        %v723 = vld [vmem:[%s562 + $0x71] sm:$0xff]
        %v724 = vld [vmem:[%s562 + $0x79] sm:$0x3f]
        %v725 = vld [vmem:[%s562 + $0x81] sm:$0xff]
        %v726 = vld [vmem:[%s562 + $0x89] sm:$0x3f]
        %v727 = vld [vmem:[%s562 + $0x91] sm:$0xff]
        %v728 = vld [vmem:[%s562 + $0x99] sm:$0x3f]
        %v729 = vld [vmem:[%s562 + $0xa1] sm:$0xff]
        %v730 = vld [vmem:[%s562 + $0xa9] sm:$0x3f]
        %v731 = vld [vmem:[%s562 + $0xb1] sm:$0xff]
        %v732 = vld [vmem:[%s562 + $0xb9] sm:$0x3f]
        %v733 = vld [vmem:[%s562 + $0xc1] sm:$0xff]
        %v734 = vld [vmem:[%s562 + $0xc9] sm:$0x3f]
        %v735 = vld [vmem:[%s562 + $0xd1] sm:$0xff]
        %v736 = vld [vmem:[%s562 + $0xd9] sm:$0x3f]
        %s737 = sadd.s32 %s207, 4
        %s738 = sld [smem:[#allocation2 + %s737]]
        %v739 = vstv %s738
        %v740 = vmul.f32 %v709, %v739
        %v741 = vmul.f32 %v710, %v739
        %v742 = vmul.f32 %v711, %v739
        %v743 = vmul.f32 %v712, %v739
        %v744 = vmul.f32 %v713, %v739
        %v745 = vmul.f32 %v714, %v739
        %v746 = vmul.f32 %v715, %v739
        %v747 = vmul.f32 %v716, %v739
        %v748 = vmul.f32 %v717, %v739
        %v749 = vmul.f32 %v718, %v739
        %v750 = vmul.f32 %v719, %v739
        %v751 = vmul.f32 %v720, %v739
        %v752 = vmul.f32 %v721, %v739
        %v753 = vmul.f32 %v722, %v739
        %v754 = vmul.f32 %v723, %v739
        %v755 = vmul.f32 %v724, %v739
        %v756 = vmul.f32 %v725, %v739
        %v757 = vmul.f32 %v726, %v739
        %v758 = vmul.f32 %v727, %v739
        %v759 = vmul.f32 %v728, %v739
        %v760 = vmul.f32 %v729, %v739
        %v761 = vmul.f32 %v730, %v739
        %v762 = vmul.f32 %v731, %v739
        %v763 = vmul.f32 %v732, %v739
        %v764 = vmul.f32 %v733, %v739
        %v765 = vmul.f32 %v734, %v739
        %v766 = vmul.f32 %v735, %v739
        %v767 = vmul.f32 %v736, %v739
        %v768 = vadd.f32 %v622, %v740
        %v769 = vadd.f32 %v623, %v741
        %v770 = vadd.f32 %v624, %v742
        %v771 = vadd.f32 %v625, %v743
        %v772 = vadd.f32 %v626, %v744
        %v773 = vadd.f32 %v627, %v745
        %v774 = vadd.f32 %v628, %v746
        %v775 = vadd.f32 %v629, %v747
        %v776 = vadd.f32 %v630, %v748
        %v777 = vadd.f32 %v631, %v749
        %v778 = vadd.f32 %v632, %v750
        %v779 = vadd.f32 %v633, %v751
        %v780 = vadd.f32 %v634, %v752
        %v781 = vadd.f32 %v635, %v753
        %v782 = vadd.f32 %v636, %v754
        %v783 = vadd.f32 %v637, %v755
        %v784 = vadd.f32 %v638, %v756
        %v785 = vadd.f32 %v639, %v757
        %v786 = vadd.f32 %v640, %v758
        %v787 = vadd.f32 %v641, %v759
        %v788 = vadd.f32 %v642, %v760
        %v789 = vadd.f32 %v643, %v761
        %v790 = vadd.f32 %v644, %v762
        %v791 = vadd.f32 %v645, %v763
        %v792 = vadd.f32 %v646, %v764
        %v793 = vadd.f32 %v647, %v765
        %v794 = vadd.f32 %v648, %v766
        %v795 = vadd.f32 %v649, %v767
        %s796 = sadd.s32 %s239, 4
        %s797 = sld [smem:[#allocation2 + %s796]]
        %v798 = vstv %s797
        %v799 = vmul.f32 %v709, %v798
        %v800 = vmul.f32 %v710, %v798
        %v801 = vmul.f32 %v711, %v798
        %v802 = vmul.f32 %v712, %v798
        %v803 = vmul.f32 %v713, %v798
        %v804 = vmul.f32 %v714, %v798
        %v805 = vmul.f32 %v715, %v798
        %v806 = vmul.f32 %v716, %v798
        %v807 = vmul.f32 %v717, %v798
        %v808 = vmul.f32 %v718, %v798
        %v809 = vmul.f32 %v719, %v798
        %v810 = vmul.f32 %v720, %v798
        %v811 = vmul.f32 %v721, %v798
        %v812 = vmul.f32 %v722, %v798
        %v813 = vmul.f32 %v723, %v798
        %v814 = vmul.f32 %v724, %v798
        %v815 = vmul.f32 %v725, %v798
        %v816 = vmul.f32 %v726, %v798
        %v817 = vmul.f32 %v727, %v798
        %v818 = vmul.f32 %v728, %v798
        %v819 = vmul.f32 %v729, %v798
        %v820 = vmul.f32 %v730, %v798
        %v821 = vmul.f32 %v731, %v798
        %v822 = vmul.f32 %v732, %v798
        %v823 = vmul.f32 %v733, %v798
        %v824 = vmul.f32 %v734, %v798
        %v825 = vmul.f32 %v735, %v798
        %v826 = vmul.f32 %v736, %v798
        %v827 = vadd.f32 %v681, %v799
        %v828 = vadd.f32 %v682, %v800
        %v829 = vadd.f32 %v683, %v801
        %v830 = vadd.f32 %v684, %v802
        %v831 = vadd.f32 %v685, %v803
        %v832 = vadd.f32 %v686, %v804
        %v833 = vadd.f32 %v687, %v805
        %v834 = vadd.f32 %v688, %v806
        %v835 = vadd.f32 %v689, %v807
        %v836 = vadd.f32 %v690, %v808
        %v837 = vadd.f32 %v691, %v809
        %v838 = vadd.f32 %v692, %v810
        %v839 = vadd.f32 %v693, %v811
        %v840 = vadd.f32 %v694, %v812
        %v841 = vadd.f32 %v695, %v813
        %v842 = vadd.f32 %v696, %v814
        %v843 = vadd.f32 %v697, %v815
        %v844 = vadd.f32 %v698, %v816
        %v845 = vadd.f32 %v699, %v817
        %v846 = vadd.f32 %v700, %v818
        %v847 = vadd.f32 %v701, %v819
        %v848 = vadd.f32 %v702, %v820
        %v849 = vadd.f32 %v703, %v821
        %v850 = vadd.f32 %v704, %v822
        %v851 = vadd.f32 %v705, %v823
        %v852 = vadd.f32 %v706, %v824
        %v853 = vadd.f32 %v707, %v825
        %v854 = vadd.f32 %v708, %v826
        %v855 = vld [vmem:[%s562 + $0x2] sm:$0xff]
        %v856 = vld [vmem:[%s562 + $0xa] sm:$0x3f]
        %v857 = vld [vmem:[%s562 + $0x12] sm:$0xff]
        %v858 = vld [vmem:[%s562 + $0x1a] sm:$0x3f]
        %v859 = vld [vmem:[%s562 + $0x22] sm:$0xff]
        %v860 = vld [vmem:[%s562 + $0x2a] sm:$0x3f]
        %v861 = vld [vmem:[%s562 + $0x32] sm:$0xff]
        %v862 = vld [vmem:[%s562 + $0x3a] sm:$0x3f]
        %v863 = vld [vmem:[%s562 + $0x42] sm:$0xff]
        %v864 = vld [vmem:[%s562 + $0x4a] sm:$0x3f]
        %v865 = vld [vmem:[%s562 + $0x52] sm:$0xff]
        %v866 = vld [vmem:[%s562 + $0x5a] sm:$0x3f]
        %v867 = vld [vmem:[%s562 + $0x62] sm:$0xff]
        %v868 = vld [vmem:[%s562 + $0x6a] sm:$0x3f]
        %v869 = vld [vmem:[%s562 + $0x72] sm:$0xff]
        %v870 = vld [vmem:[%s562 + $0x7a] sm:$0x3f]
        %v871 = vld [vmem:[%s562 + $0x82] sm:$0xff]
        %v872 = vld [vmem:[%s562 + $0x8a] sm:$0x3f]
        %v873 = vld [vmem:[%s562 + $0x92] sm:$0xff]
        %v874 = vld [vmem:[%s562 + $0x9a] sm:$0x3f]
        %v875 = vld [vmem:[%s562 + $0xa2] sm:$0xff]
        %v876 = vld [vmem:[%s562 + $0xaa] sm:$0x3f]
        %v877 = vld [vmem:[%s562 + $0xb2] sm:$0xff]
        %v878 = vld [vmem:[%s562 + $0xba] sm:$0x3f]
        %v879 = vld [vmem:[%s562 + $0xc2] sm:$0xff]
        %v880 = vld [vmem:[%s562 + $0xca] sm:$0x3f]
        %v881 = vld [vmem:[%s562 + $0xd2] sm:$0xff]
        %v882 = vld [vmem:[%s562 + $0xda] sm:$0x3f]
        %s883 = sadd.s32 %s207, 5
        %s884 = sld [smem:[#allocation2 + %s883]]
        %v885 = vstv %s884
        %v886 = vmul.f32 %v855, %v885
        %v887 = vmul.f32 %v856, %v885
        %v888 = vmul.f32 %v857, %v885
        %v889 = vmul.f32 %v858, %v885
        %v890 = vmul.f32 %v859, %v885
        %v891 = vmul.f32 %v860, %v885
        %v892 = vmul.f32 %v861, %v885
        %v893 = vmul.f32 %v862, %v885
        %v894 = vmul.f32 %v863, %v885
        %v895 = vmul.f32 %v864, %v885
        %v896 = vmul.f32 %v865, %v885
        %v897 = vmul.f32 %v866, %v885
        %v898 = vmul.f32 %v867, %v885
        %v899 = vmul.f32 %v868, %v885
        %v900 = vmul.f32 %v869, %v885
        %v901 = vmul.f32 %v870, %v885
        %v902 = vmul.f32 %v871, %v885
        %v903 = vmul.f32 %v872, %v885
        %v904 = vmul.f32 %v873, %v885
        %v905 = vmul.f32 %v874, %v885
        %v906 = vmul.f32 %v875, %v885
        %v907 = vmul.f32 %v876, %v885
        %v908 = vmul.f32 %v877, %v885
        %v909 = vmul.f32 %v878, %v885
        %v910 = vmul.f32 %v879, %v885
        %v911 = vmul.f32 %v880, %v885
        %v912 = vmul.f32 %v881, %v885
        %v913 = vmul.f32 %v882, %v885
        %v914 = vadd.f32 %v768, %v886
        %v915 = vadd.f32 %v769, %v887
        %v916 = vadd.f32 %v770, %v888
        %v917 = vadd.f32 %v771, %v889
        %v918 = vadd.f32 %v772, %v890
        %v919 = vadd.f32 %v773, %v891
        %v920 = vadd.f32 %v774, %v892
        %v921 = vadd.f32 %v775, %v893
        %v922 = vadd.f32 %v776, %v894
        %v923 = vadd.f32 %v777, %v895
        %v924 = vadd.f32 %v778, %v896
        %v925 = vadd.f32 %v779, %v897
        %v926 = vadd.f32 %v780, %v898
        %v927 = vadd.f32 %v781, %v899
        %v928 = vadd.f32 %v782, %v900
        %v929 = vadd.f32 %v783, %v901
        %v930 = vadd.f32 %v784, %v902
        %v931 = vadd.f32 %v785, %v903
        %v932 = vadd.f32 %v786, %v904
        %v933 = vadd.f32 %v787, %v905
        %v934 = vadd.f32 %v788, %v906
        %v935 = vadd.f32 %v789, %v907
        %v936 = vadd.f32 %v790, %v908
        %v937 = vadd.f32 %v791, %v909
        %v938 = vadd.f32 %v792, %v910
        %v939 = vadd.f32 %v793, %v911
        %v940 = vadd.f32 %v794, %v912
        %v941 = vadd.f32 %v795, %v913
        %s942 = sadd.s32 %s239, 5
        %s943 = sld [smem:[#allocation2 + %s942]]
        %v944 = vstv %s943
        %v945 = vmul.f32 %v855, %v944
        %v946 = vmul.f32 %v856, %v944
        %v947 = vmul.f32 %v857, %v944
        %v948 = vmul.f32 %v858, %v944
        %v949 = vmul.f32 %v859, %v944
        %v950 = vmul.f32 %v860, %v944
        %v951 = vmul.f32 %v861, %v944
        %v952 = vmul.f32 %v862, %v944
        %v953 = vmul.f32 %v863, %v944
        %v954 = vmul.f32 %v864, %v944
        %v955 = vmul.f32 %v865, %v944
        %v956 = vmul.f32 %v866, %v944
        %v957 = vmul.f32 %v867, %v944
        %v958 = vmul.f32 %v868, %v944
        %v959 = vmul.f32 %v869, %v944
        %v960 = vmul.f32 %v870, %v944
        %v961 = vmul.f32 %v871, %v944
        %v962 = vmul.f32 %v872, %v944
        %v963 = vmul.f32 %v873, %v944
        %v964 = vmul.f32 %v874, %v944
        %v965 = vmul.f32 %v875, %v944
        %v966 = vmul.f32 %v876, %v944
        %v967 = vmul.f32 %v877, %v944
        %v968 = vmul.f32 %v878, %v944
        %v969 = vmul.f32 %v879, %v944
        %v970 = vmul.f32 %v880, %v944
        %v971 = vmul.f32 %v881, %v944
        %v972 = vmul.f32 %v882, %v944
        %v973 = vadd.f32 %v827, %v945
        %v974 = vadd.f32 %v828, %v946
        %v975 = vadd.f32 %v829, %v947
        %v976 = vadd.f32 %v830, %v948
        %v977 = vadd.f32 %v831, %v949
        %v978 = vadd.f32 %v832, %v950
        %v979 = vadd.f32 %v833, %v951
        %v980 = vadd.f32 %v834, %v952
        %v981 = vadd.f32 %v835, %v953
        %v982 = vadd.f32 %v836, %v954
        %v983 = vadd.f32 %v837, %v955
        %v984 = vadd.f32 %v838, %v956
        %v985 = vadd.f32 %v839, %v957
        %v986 = vadd.f32 %v840, %v958
        %v987 = vadd.f32 %v841, %v959
        %v988 = vadd.f32 %v842, %v960
        %v989 = vadd.f32 %v843, %v961
        %v990 = vadd.f32 %v844, %v962
        %v991 = vadd.f32 %v845, %v963
        %v992 = vadd.f32 %v846, %v964
        %v993 = vadd.f32 %v847, %v965
        %v994 = vadd.f32 %v848, %v966
        %v995 = vadd.f32 %v849, %v967
        %v996 = vadd.f32 %v850, %v968
        %v997 = vadd.f32 %v851, %v969
        %v998 = vadd.f32 %v852, %v970
        %v999 = vadd.f32 %v853, %v971
        %v1000 = vadd.f32 %v854, %v972
        %s1001 = scalar_lea.vmem %s167, 32
        %v1002 = vld [vmem:[%s1001] sm:$0xff]
        %v1003 = vld [vmem:[%s1001 + $0x8] sm:$0x3f]
        %v1004 = vld [vmem:[%s1001 + $0x10] sm:$0xff]
        %v1005 = vld [vmem:[%s1001 + $0x18] sm:$0x3f]
        %v1006 = vld [vmem:[%s1001 + $0x20] sm:$0xff]
        %v1007 = vld [vmem:[%s1001 + $0x28] sm:$0x3f]
        %v1008 = vld [vmem:[%s1001 + $0x30] sm:$0xff]
        %v1009 = vld [vmem:[%s1001 + $0x38] sm:$0x3f]
        %v1010 = vld [vmem:[%s1001 + $0x40] sm:$0xff]
        %v1011 = vld [vmem:[%s1001 + $0x48] sm:$0x3f]
        %v1012 = vld [vmem:[%s1001 + $0x50] sm:$0xff]
        %v1013 = vld [vmem:[%s1001 + $0x58] sm:$0x3f]
        %v1014 = vld [vmem:[%s1001 + $0x60] sm:$0xff]
        %v1015 = vld [vmem:[%s1001 + $0x68] sm:$0x3f]
        %v1016 = vld [vmem:[%s1001 + $0x70] sm:$0xff]
        %v1017 = vld [vmem:[%s1001 + $0x78] sm:$0x3f]
        %v1018 = vld [vmem:[%s1001 + $0x80] sm:$0xff]
        %v1019 = vld [vmem:[%s1001 + $0x88] sm:$0x3f]
        %v1020 = vld [vmem:[%s1001 + $0x90] sm:$0xff]
        %v1021 = vld [vmem:[%s1001 + $0x98] sm:$0x3f]
        %v1022 = vld [vmem:[%s1001 + $0xa0] sm:$0xff]
        %v1023 = vld [vmem:[%s1001 + $0xa8] sm:$0x3f]
        %v1024 = vld [vmem:[%s1001 + $0xb0] sm:$0xff]
        %v1025 = vld [vmem:[%s1001 + $0xb8] sm:$0x3f]
        %v1026 = vld [vmem:[%s1001 + $0xc0] sm:$0xff]
        %v1027 = vld [vmem:[%s1001 + $0xc8] sm:$0x3f]
        %v1028 = vld [vmem:[%s1001 + $0xd0] sm:$0xff]
        %v1029 = vld [vmem:[%s1001 + $0xd8] sm:$0x3f]
        %s1030 = sadd.s32 %s207, 6
        %s1031 = sld [smem:[#allocation2 + %s1030]]
        %v1032 = vstv %s1031
        %v1033 = vmul.f32 %v1002, %v1032
        %v1034 = vmul.f32 %v1003, %v1032
        %v1035 = vmul.f32 %v1004, %v1032
        %v1036 = vmul.f32 %v1005, %v1032
        %v1037 = vmul.f32 %v1006, %v1032
        %v1038 = vmul.f32 %v1007, %v1032
        %v1039 = vmul.f32 %v1008, %v1032
        %v1040 = vmul.f32 %v1009, %v1032
        %v1041 = vmul.f32 %v1010, %v1032
        %v1042 = vmul.f32 %v1011, %v1032
        %v1043 = vmul.f32 %v1012, %v1032
        %v1044 = vmul.f32 %v1013, %v1032
        %v1045 = vmul.f32 %v1014, %v1032
        %v1046 = vmul.f32 %v1015, %v1032
        %v1047 = vmul.f32 %v1016, %v1032
        %v1048 = vmul.f32 %v1017, %v1032
        %v1049 = vmul.f32 %v1018, %v1032
        %v1050 = vmul.f32 %v1019, %v1032
        %v1051 = vmul.f32 %v1020, %v1032
        %v1052 = vmul.f32 %v1021, %v1032
        %v1053 = vmul.f32 %v1022, %v1032
        %v1054 = vmul.f32 %v1023, %v1032
        %v1055 = vmul.f32 %v1024, %v1032
        %v1056 = vmul.f32 %v1025, %v1032
        %v1057 = vmul.f32 %v1026, %v1032
        %v1058 = vmul.f32 %v1027, %v1032
        %v1059 = vmul.f32 %v1028, %v1032
        %v1060 = vmul.f32 %v1029, %v1032
        %v1061 = vadd.f32 %v914, %v1033
        %v1062 = vadd.f32 %v915, %v1034
        %v1063 = vadd.f32 %v916, %v1035
        %v1064 = vadd.f32 %v917, %v1036
        %v1065 = vadd.f32 %v918, %v1037
        %v1066 = vadd.f32 %v919, %v1038
        %v1067 = vadd.f32 %v920, %v1039
        %v1068 = vadd.f32 %v921, %v1040
        %v1069 = vadd.f32 %v922, %v1041
        %v1070 = vadd.f32 %v923, %v1042
        %v1071 = vadd.f32 %v924, %v1043
        %v1072 = vadd.f32 %v925, %v1044
        %v1073 = vadd.f32 %v926, %v1045
        %v1074 = vadd.f32 %v927, %v1046
        %v1075 = vadd.f32 %v928, %v1047
        %v1076 = vadd.f32 %v929, %v1048
        %v1077 = vadd.f32 %v930, %v1049
        %v1078 = vadd.f32 %v931, %v1050
        %v1079 = vadd.f32 %v932, %v1051
        %v1080 = vadd.f32 %v933, %v1052
        %v1081 = vadd.f32 %v934, %v1053
        %v1082 = vadd.f32 %v935, %v1054
        %v1083 = vadd.f32 %v936, %v1055
        %v1084 = vadd.f32 %v937, %v1056
        %v1085 = vadd.f32 %v938, %v1057
        %v1086 = vadd.f32 %v939, %v1058
        %v1087 = vadd.f32 %v940, %v1059
        %v1088 = vadd.f32 %v941, %v1060
        %s1089 = sadd.s32 %s239, 6
        %s1090 = sld [smem:[#allocation2 + %s1089]]
        %v1091 = vstv %s1090
        %v1092 = vmul.f32 %v1002, %v1091
        %v1093 = vmul.f32 %v1003, %v1091
        %v1094 = vmul.f32 %v1004, %v1091
        %v1095 = vmul.f32 %v1005, %v1091
        %v1096 = vmul.f32 %v1006, %v1091
        %v1097 = vmul.f32 %v1007, %v1091
        %v1098 = vmul.f32 %v1008, %v1091
        %v1099 = vmul.f32 %v1009, %v1091
        %v1100 = vmul.f32 %v1010, %v1091
        %v1101 = vmul.f32 %v1011, %v1091
        %v1102 = vmul.f32 %v1012, %v1091
        %v1103 = vmul.f32 %v1013, %v1091
        %v1104 = vmul.f32 %v1014, %v1091
        %v1105 = vmul.f32 %v1015, %v1091
        %v1106 = vmul.f32 %v1016, %v1091
        %v1107 = vmul.f32 %v1017, %v1091
        %v1108 = vmul.f32 %v1018, %v1091
        %v1109 = vmul.f32 %v1019, %v1091
        %v1110 = vmul.f32 %v1020, %v1091
        %v1111 = vmul.f32 %v1021, %v1091
        %v1112 = vmul.f32 %v1022, %v1091
        %v1113 = vmul.f32 %v1023, %v1091
        %v1114 = vmul.f32 %v1024, %v1091
        %v1115 = vmul.f32 %v1025, %v1091
        %v1116 = vmul.f32 %v1026, %v1091
        %v1117 = vmul.f32 %v1027, %v1091
        %v1118 = vmul.f32 %v1028, %v1091
        %v1119 = vmul.f32 %v1029, %v1091
        %v1120 = vadd.f32 %v973, %v1092
        %v1121 = vadd.f32 %v974, %v1093
        %v1122 = vadd.f32 %v975, %v1094
        %v1123 = vadd.f32 %v976, %v1095
        %v1124 = vadd.f32 %v977, %v1096
        %v1125 = vadd.f32 %v978, %v1097
        %v1126 = vadd.f32 %v979, %v1098
        %v1127 = vadd.f32 %v980, %v1099
        %v1128 = vadd.f32 %v981, %v1100
        %v1129 = vadd.f32 %v982, %v1101
        %v1130 = vadd.f32 %v983, %v1102
        %v1131 = vadd.f32 %v984, %v1103
        %v1132 = vadd.f32 %v985, %v1104
        %v1133 = vadd.f32 %v986, %v1105
        %v1134 = vadd.f32 %v987, %v1106
        %v1135 = vadd.f32 %v988, %v1107
        %v1136 = vadd.f32 %v989, %v1108
        %v1137 = vadd.f32 %v990, %v1109
        %v1138 = vadd.f32 %v991, %v1110
        %v1139 = vadd.f32 %v992, %v1111
        %v1140 = vadd.f32 %v993, %v1112
        %v1141 = vadd.f32 %v994, %v1113
        %v1142 = vadd.f32 %v995, %v1114
        %v1143 = vadd.f32 %v996, %v1115
        %v1144 = vadd.f32 %v997, %v1116
        %v1145 = vadd.f32 %v998, %v1117
        %v1146 = vadd.f32 %v999, %v1118
        %v1147 = vadd.f32 %v1000, %v1119
        %v1148 = vld [vmem:[%s1001 + $0x1] sm:$0xff]
        %v1149 = vld [vmem:[%s1001 + $0x9] sm:$0x3f]
        %v1150 = vld [vmem:[%s1001 + $0x11] sm:$0xff]
        %v1151 = vld [vmem:[%s1001 + $0x19] sm:$0x3f]
        %v1152 = vld [vmem:[%s1001 + $0x21] sm:$0xff]
        %v1153 = vld [vmem:[%s1001 + $0x29] sm:$0x3f]
        %v1154 = vld [vmem:[%s1001 + $0x31] sm:$0xff]
        %v1155 = vld [vmem:[%s1001 + $0x39] sm:$0x3f]
        %v1156 = vld [vmem:[%s1001 + $0x41] sm:$0xff]
        %v1157 = vld [vmem:[%s1001 + $0x49] sm:$0x3f]
        %v1158 = vld [vmem:[%s1001 + $0x51] sm:$0xff]
        %v1159 = vld [vmem:[%s1001 + $0x59] sm:$0x3f]
        %v1160 = vld [vmem:[%s1001 + $0x61] sm:$0xff]
        %v1161 = vld [vmem:[%s1001 + $0x69] sm:$0x3f]
        %v1162 = vld [vmem:[%s1001 + $0x71] sm:$0xff]
        %v1163 = vld [vmem:[%s1001 + $0x79] sm:$0x3f]
        %v1164 = vld [vmem:[%s1001 + $0x81] sm:$0xff]
        %v1165 = vld [vmem:[%s1001 + $0x89] sm:$0x3f]
        %v1166 = vld [vmem:[%s1001 + $0x91] sm:$0xff]
        %v1167 = vld [vmem:[%s1001 + $0x99] sm:$0x3f]
        %v1168 = vld [vmem:[%s1001 + $0xa1] sm:$0xff]
        %v1169 = vld [vmem:[%s1001 + $0xa9] sm:$0x3f]
        %v1170 = vld [vmem:[%s1001 + $0xb1] sm:$0xff]
        %v1171 = vld [vmem:[%s1001 + $0xb9] sm:$0x3f]
        %v1172 = vld [vmem:[%s1001 + $0xc1] sm:$0xff]
        %v1173 = vld [vmem:[%s1001 + $0xc9] sm:$0x3f]
        %v1174 = vld [vmem:[%s1001 + $0xd1] sm:$0xff]
        %v1175 = vld [vmem:[%s1001 + $0xd9] sm:$0x3f]
        %s1176 = sadd.s32 %s207, 7
        %s1177 = sld [smem:[#allocation2 + %s1176]]
        %v1178 = vstv %s1177
        %v1179 = vmul.f32 %v1148, %v1178
        %v1180 = vmul.f32 %v1149, %v1178
        %v1181 = vmul.f32 %v1150, %v1178
        %v1182 = vmul.f32 %v1151, %v1178
        %v1183 = vmul.f32 %v1152, %v1178
        %v1184 = vmul.f32 %v1153, %v1178
        %v1185 = vmul.f32 %v1154, %v1178
        %v1186 = vmul.f32 %v1155, %v1178
        %v1187 = vmul.f32 %v1156, %v1178
        %v1188 = vmul.f32 %v1157, %v1178
        %v1189 = vmul.f32 %v1158, %v1178
        %v1190 = vmul.f32 %v1159, %v1178
        %v1191 = vmul.f32 %v1160, %v1178
        %v1192 = vmul.f32 %v1161, %v1178
        %v1193 = vmul.f32 %v1162, %v1178
        %v1194 = vmul.f32 %v1163, %v1178
        %v1195 = vmul.f32 %v1164, %v1178
        %v1196 = vmul.f32 %v1165, %v1178
        %v1197 = vmul.f32 %v1166, %v1178
        %v1198 = vmul.f32 %v1167, %v1178
        %v1199 = vmul.f32 %v1168, %v1178
        %v1200 = vmul.f32 %v1169, %v1178
        %v1201 = vmul.f32 %v1170, %v1178
        %v1202 = vmul.f32 %v1171, %v1178
        %v1203 = vmul.f32 %v1172, %v1178
        %v1204 = vmul.f32 %v1173, %v1178
        %v1205 = vmul.f32 %v1174, %v1178
        %v1206 = vmul.f32 %v1175, %v1178
        %v1207 = vadd.f32 %v1061, %v1179
        %v1208 = vadd.f32 %v1062, %v1180
        %v1209 = vadd.f32 %v1063, %v1181
        %v1210 = vadd.f32 %v1064, %v1182
        %v1211 = vadd.f32 %v1065, %v1183
        %v1212 = vadd.f32 %v1066, %v1184
        %v1213 = vadd.f32 %v1067, %v1185
        %v1214 = vadd.f32 %v1068, %v1186
        %v1215 = vadd.f32 %v1069, %v1187
        %v1216 = vadd.f32 %v1070, %v1188
        %v1217 = vadd.f32 %v1071, %v1189
        %v1218 = vadd.f32 %v1072, %v1190
        %v1219 = vadd.f32 %v1073, %v1191
        %v1220 = vadd.f32 %v1074, %v1192
        %v1221 = vadd.f32 %v1075, %v1193
        %v1222 = vadd.f32 %v1076, %v1194
        %v1223 = vadd.f32 %v1077, %v1195
        %v1224 = vadd.f32 %v1078, %v1196
        %v1225 = vadd.f32 %v1079, %v1197
        %v1226 = vadd.f32 %v1080, %v1198
        %v1227 = vadd.f32 %v1081, %v1199
        %v1228 = vadd.f32 %v1082, %v1200
        %v1229 = vadd.f32 %v1083, %v1201
        %v1230 = vadd.f32 %v1084, %v1202
        %v1231 = vadd.f32 %v1085, %v1203
        %v1232 = vadd.f32 %v1086, %v1204
        %v1233 = vadd.f32 %v1087, %v1205
        %v1234 = vadd.f32 %v1088, %v1206
        %s1235 = sadd.s32 %s239, 7
        %s1236 = sld [smem:[#allocation2 + %s1235]]
        %v1237 = vstv %s1236
        %v1238 = vmul.f32 %v1148, %v1237
        %v1239 = vmul.f32 %v1149, %v1237
        %v1240 = vmul.f32 %v1150, %v1237
        %v1241 = vmul.f32 %v1151, %v1237
        %v1242 = vmul.f32 %v1152, %v1237
        %v1243 = vmul.f32 %v1153, %v1237
        %v1244 = vmul.f32 %v1154, %v1237
        %v1245 = vmul.f32 %v1155, %v1237
        %v1246 = vmul.f32 %v1156, %v1237
        %v1247 = vmul.f32 %v1157, %v1237
        %v1248 = vmul.f32 %v1158, %v1237
        %v1249 = vmul.f32 %v1159, %v1237
        %v1250 = vmul.f32 %v1160, %v1237
        %v1251 = vmul.f32 %v1161, %v1237
        %v1252 = vmul.f32 %v1162, %v1237
        %v1253 = vmul.f32 %v1163, %v1237
        %v1254 = vmul.f32 %v1164, %v1237
        %v1255 = vmul.f32 %v1165, %v1237
        %v1256 = vmul.f32 %v1166, %v1237
        %v1257 = vmul.f32 %v1167, %v1237
        %v1258 = vmul.f32 %v1168, %v1237
        %v1259 = vmul.f32 %v1169, %v1237
        %v1260 = vmul.f32 %v1170, %v1237
        %v1261 = vmul.f32 %v1171, %v1237
        %v1262 = vmul.f32 %v1172, %v1237
        %v1263 = vmul.f32 %v1173, %v1237
        %v1264 = vmul.f32 %v1174, %v1237
        %v1265 = vmul.f32 %v1175, %v1237
        %v1266 = vadd.f32 %v1120, %v1238
        %v1267 = vadd.f32 %v1121, %v1239
        %v1268 = vadd.f32 %v1122, %v1240
        %v1269 = vadd.f32 %v1123, %v1241
        %v1270 = vadd.f32 %v1124, %v1242
        %v1271 = vadd.f32 %v1125, %v1243
        %v1272 = vadd.f32 %v1126, %v1244
        %v1273 = vadd.f32 %v1127, %v1245
        %v1274 = vadd.f32 %v1128, %v1246
        %v1275 = vadd.f32 %v1129, %v1247
        %v1276 = vadd.f32 %v1130, %v1248
        %v1277 = vadd.f32 %v1131, %v1249
        %v1278 = vadd.f32 %v1132, %v1250
        %v1279 = vadd.f32 %v1133, %v1251
        %v1280 = vadd.f32 %v1134, %v1252
        %v1281 = vadd.f32 %v1135, %v1253
        %v1282 = vadd.f32 %v1136, %v1254
        %v1283 = vadd.f32 %v1137, %v1255
        %v1284 = vadd.f32 %v1138, %v1256
        %v1285 = vadd.f32 %v1139, %v1257
        %v1286 = vadd.f32 %v1140, %v1258
        %v1287 = vadd.f32 %v1141, %v1259
        %v1288 = vadd.f32 %v1142, %v1260
        %v1289 = vadd.f32 %v1143, %v1261
        %v1290 = vadd.f32 %v1144, %v1262
        %v1291 = vadd.f32 %v1145, %v1263
        %v1292 = vadd.f32 %v1146, %v1264
        %v1293 = vadd.f32 %v1147, %v1265
        %v1294 = vld [vmem:[%s1001 + $0x2] sm:$0xff]
        %v1295 = vld [vmem:[%s1001 + $0xa] sm:$0x3f]
        %v1296 = vld [vmem:[%s1001 + $0x12] sm:$0xff]
        %v1297 = vld [vmem:[%s1001 + $0x1a] sm:$0x3f]
        %v1298 = vld [vmem:[%s1001 + $0x22] sm:$0xff]
        %v1299 = vld [vmem:[%s1001 + $0x2a] sm:$0x3f]
        %v1300 = vld [vmem:[%s1001 + $0x32] sm:$0xff]
        %v1301 = vld [vmem:[%s1001 + $0x3a] sm:$0x3f]
        %v1302 = vld [vmem:[%s1001 + $0x42] sm:$0xff]
        %v1303 = vld [vmem:[%s1001 + $0x4a] sm:$0x3f]
        %v1304 = vld [vmem:[%s1001 + $0x52] sm:$0xff]
        %v1305 = vld [vmem:[%s1001 + $0x5a] sm:$0x3f]
        %v1306 = vld [vmem:[%s1001 + $0x62] sm:$0xff]
        %v1307 = vld [vmem:[%s1001 + $0x6a] sm:$0x3f]
        %v1308 = vld [vmem:[%s1001 + $0x72] sm:$0xff]
        %v1309 = vld [vmem:[%s1001 + $0x7a] sm:$0x3f]
        %v1310 = vld [vmem:[%s1001 + $0x82] sm:$0xff]
        %v1311 = vld [vmem:[%s1001 + $0x8a] sm:$0x3f]
        %v1312 = vld [vmem:[%s1001 + $0x92] sm:$0xff]
        %v1313 = vld [vmem:[%s1001 + $0x9a] sm:$0x3f]
        %v1314 = vld [vmem:[%s1001 + $0xa2] sm:$0xff]
        %v1315 = vld [vmem:[%s1001 + $0xaa] sm:$0x3f]
        %v1316 = vld [vmem:[%s1001 + $0xb2] sm:$0xff]
        %v1317 = vld [vmem:[%s1001 + $0xba] sm:$0x3f]
        %v1318 = vld [vmem:[%s1001 + $0xc2] sm:$0xff]
        %v1319 = vld [vmem:[%s1001 + $0xca] sm:$0x3f]
        %v1320 = vld [vmem:[%s1001 + $0xd2] sm:$0xff]
        %v1321 = vld [vmem:[%s1001 + $0xda] sm:$0x3f]
        %s1322 = sadd.s32 %s207, 8
        %s1323 = sld [smem:[#allocation2 + %s1322]]
        %v1324 = vstv %s1323
        %v1325 = vmul.f32 %v1294, %v1324
        %v1326 = vmul.f32 %v1295, %v1324
        %v1327 = vmul.f32 %v1296, %v1324
        %v1328 = vmul.f32 %v1297, %v1324
        %v1329 = vmul.f32 %v1298, %v1324
        %v1330 = vmul.f32 %v1299, %v1324
        %v1331 = vmul.f32 %v1300, %v1324
        %v1332 = vmul.f32 %v1301, %v1324
        %v1333 = vmul.f32 %v1302, %v1324
        %v1334 = vmul.f32 %v1303, %v1324
        %v1335 = vmul.f32 %v1304, %v1324
        %v1336 = vmul.f32 %v1305, %v1324
        %v1337 = vmul.f32 %v1306, %v1324
        %v1338 = vmul.f32 %v1307, %v1324
        %v1339 = vmul.f32 %v1308, %v1324
        %v1340 = vmul.f32 %v1309, %v1324
        %v1341 = vmul.f32 %v1310, %v1324
        %v1342 = vmul.f32 %v1311, %v1324
        %v1343 = vmul.f32 %v1312, %v1324
        %v1344 = vmul.f32 %v1313, %v1324
        %v1345 = vmul.f32 %v1314, %v1324
        %v1346 = vmul.f32 %v1315, %v1324
        %v1347 = vmul.f32 %v1316, %v1324
        %v1348 = vmul.f32 %v1317, %v1324
        %v1349 = vmul.f32 %v1318, %v1324
        %v1350 = vmul.f32 %v1319, %v1324
        %v1351 = vmul.f32 %v1320, %v1324
        %v1352 = vmul.f32 %v1321, %v1324
        %v1353 = vadd.f32 %v1207, %v1325
        %v1354 = vadd.f32 %v1208, %v1326
        %v1355 = vadd.f32 %v1209, %v1327
        %v1356 = vadd.f32 %v1210, %v1328
        %v1357 = vadd.f32 %v1211, %v1329
        %v1358 = vadd.f32 %v1212, %v1330
        %v1359 = vadd.f32 %v1213, %v1331
        %v1360 = vadd.f32 %v1214, %v1332
        %v1361 = vadd.f32 %v1215, %v1333
        %v1362 = vadd.f32 %v1216, %v1334
        %v1363 = vadd.f32 %v1217, %v1335
        %v1364 = vadd.f32 %v1218, %v1336
        %v1365 = vadd.f32 %v1219, %v1337
        %v1366 = vadd.f32 %v1220, %v1338
        %v1367 = vadd.f32 %v1221, %v1339
        %v1368 = vadd.f32 %v1222, %v1340
        %v1369 = vadd.f32 %v1223, %v1341
        %v1370 = vadd.f32 %v1224, %v1342
        %v1371 = vadd.f32 %v1225, %v1343
        %v1372 = vadd.f32 %v1226, %v1344
        %v1373 = vadd.f32 %v1227, %v1345
        %v1374 = vadd.f32 %v1228, %v1346
        %v1375 = vadd.f32 %v1229, %v1347
        %v1376 = vadd.f32 %v1230, %v1348
        %v1377 = vadd.f32 %v1231, %v1349
        %v1378 = vadd.f32 %v1232, %v1350
        %v1379 = vadd.f32 %v1233, %v1351
        %v1380 = vadd.f32 %v1234, %v1352
        %s1381 = sadd.s32 %s239, 8
        %s1382 = sld [smem:[#allocation2 + %s1381]]
        %v1383 = vstv %s1382
        %v1384 = vmul.f32 %v1294, %v1383
        %v1385 = vmul.f32 %v1295, %v1383
        %v1386 = vmul.f32 %v1296, %v1383
        %v1387 = vmul.f32 %v1297, %v1383
        %v1388 = vmul.f32 %v1298, %v1383
        %v1389 = vmul.f32 %v1299, %v1383
        %v1390 = vmul.f32 %v1300, %v1383
        %v1391 = vmul.f32 %v1301, %v1383
        %v1392 = vmul.f32 %v1302, %v1383
        %v1393 = vmul.f32 %v1303, %v1383
        %v1394 = vmul.f32 %v1304, %v1383
        %v1395 = vmul.f32 %v1305, %v1383
        %v1396 = vmul.f32 %v1306, %v1383
        %v1397 = vmul.f32 %v1307, %v1383
        %v1398 = vmul.f32 %v1308, %v1383
        %v1399 = vmul.f32 %v1309, %v1383
        %v1400 = vmul.f32 %v1310, %v1383
        %v1401 = vmul.f32 %v1311, %v1383
        %v1402 = vmul.f32 %v1312, %v1383
        %v1403 = vmul.f32 %v1313, %v1383
        %v1404 = vmul.f32 %v1314, %v1383
        %v1405 = vmul.f32 %v1315, %v1383
        %v1406 = vmul.f32 %v1316, %v1383
        %v1407 = vmul.f32 %v1317, %v1383
        %v1408 = vmul.f32 %v1318, %v1383
        %v1409 = vmul.f32 %v1319, %v1383
        %v1410 = vmul.f32 %v1320, %v1383
        %v1411 = vmul.f32 %v1321, %v1383
        %v1412 = vadd.f32 %v1266, %v1384
        %v1413 = vadd.f32 %v1267, %v1385
        %v1414 = vadd.f32 %v1268, %v1386
        %v1415 = vadd.f32 %v1269, %v1387
        %v1416 = vadd.f32 %v1270, %v1388
        %v1417 = vadd.f32 %v1271, %v1389
        %v1418 = vadd.f32 %v1272, %v1390
        %v1419 = vadd.f32 %v1273, %v1391
        %v1420 = vadd.f32 %v1274, %v1392
        %v1421 = vadd.f32 %v1275, %v1393
        %v1422 = vadd.f32 %v1276, %v1394
        %v1423 = vadd.f32 %v1277, %v1395
        %v1424 = vadd.f32 %v1278, %v1396
        %v1425 = vadd.f32 %v1279, %v1397
        %v1426 = vadd.f32 %v1280, %v1398
        %v1427 = vadd.f32 %v1281, %v1399
        %v1428 = vadd.f32 %v1282, %v1400
        %v1429 = vadd.f32 %v1283, %v1401
        %v1430 = vadd.f32 %v1284, %v1402
        %v1431 = vadd.f32 %v1285, %v1403
        %v1432 = vadd.f32 %v1286, %v1404
        %v1433 = vadd.f32 %v1287, %v1405
        %v1434 = vadd.f32 %v1288, %v1406
        %v1435 = vadd.f32 %v1289, %v1407
        %v1436 = vadd.f32 %v1290, %v1408
        %v1437 = vadd.f32 %v1291, %v1409
        %v1438 = vadd.f32 %v1292, %v1410
        %v1439 = vadd.f32 %v1293, %v1411
        %vm1440 = vcmask 15360
        %1441 = vst.msk [vmem:[%s176] sm:$0xff] %vm1440, %v1353
        %vm1442 = vcmask 13312
        %1443 = vst.msk [vmem:[%s176 + $0x8] sm:$0x3f] %vm1442, %v1354
        %1444 = vst.msk [vmem:[%s176 + $0x10] sm:$0xff] %vm1440, %v1355
        %1445 = vst.msk [vmem:[%s176 + $0x18] sm:$0x3f] %vm1442, %v1356
        %1446 = vst.msk [vmem:[%s176 + $0x20] sm:$0xff] %vm1440, %v1357
        %1447 = vst.msk [vmem:[%s176 + $0x28] sm:$0x3f] %vm1442, %v1358
        %1448 = vst.msk [vmem:[%s176 + $0x30] sm:$0xff] %vm1440, %v1359
        %1449 = vst.msk [vmem:[%s176 + $0x38] sm:$0x3f] %vm1442, %v1360
        %1450 = vst.msk [vmem:[%s176 + $0x40] sm:$0xff] %vm1440, %v1361
        %1451 = vst.msk [vmem:[%s176 + $0x48] sm:$0x3f] %vm1442, %v1362
        %1452 = vst.msk [vmem:[%s176 + $0x50] sm:$0xff] %vm1440, %v1363
        %1453 = vst.msk [vmem:[%s176 + $0x58] sm:$0x3f] %vm1442, %v1364
        %1454 = vst.msk [vmem:[%s176 + $0x60] sm:$0xff] %vm1440, %v1365
        %1455 = vst.msk [vmem:[%s176 + $0x68] sm:$0x3f] %vm1442, %v1366
        %1456 = vst.msk [vmem:[%s176 + $0x70] sm:$0xff] %vm1440, %v1367
        %1457 = vst.msk [vmem:[%s176 + $0x78] sm:$0x3f] %vm1442, %v1368
        %1458 = vst.msk [vmem:[%s176 + $0x80] sm:$0xff] %vm1440, %v1369
        %1459 = vst.msk [vmem:[%s176 + $0x88] sm:$0x3f] %vm1442, %v1370
        %1460 = vst.msk [vmem:[%s176 + $0x90] sm:$0xff] %vm1440, %v1371
        %1461 = vst.msk [vmem:[%s176 + $0x98] sm:$0x3f] %vm1442, %v1372
        %1462 = vst.msk [vmem:[%s176 + $0xa0] sm:$0xff] %vm1440, %v1373
        %1463 = vst.msk [vmem:[%s176 + $0xa8] sm:$0x3f] %vm1442, %v1374
        %1464 = vst.msk [vmem:[%s176 + $0xb0] sm:$0xff] %vm1440, %v1375
        %1465 = vst.msk [vmem:[%s176 + $0xb8] sm:$0x3f] %vm1442, %v1376
        %1466 = vst.msk [vmem:[%s176 + $0xc0] sm:$0xff] %vm1440, %v1377
        %1467 = vst.msk [vmem:[%s176 + $0xc8] sm:$0x3f] %vm1442, %v1378
        %1468 = vst.msk [vmem:[%s176 + $0xd0] sm:$0xff] %vm1440, %v1379
        %1469 = vst.msk [vmem:[%s176 + $0xd8] sm:$0x3f] %vm1442, %v1380
        %s1470 = scalar_lea.vmem %s176, 224
        %1471 = vst.msk [vmem:[%s1470] sm:$0xff] %vm1440, %v1412
        %1472 = vst.msk [vmem:[%s1470 + $0x8] sm:$0x3f] %vm1442, %v1413
        %1473 = vst.msk [vmem:[%s1470 + $0x10] sm:$0xff] %vm1440, %v1414
        %1474 = vst.msk [vmem:[%s1470 + $0x18] sm:$0x3f] %vm1442, %v1415
        %1475 = vst.msk [vmem:[%s1470 + $0x20] sm:$0xff] %vm1440, %v1416
        %1476 = vst.msk [vmem:[%s1470 + $0x28] sm:$0x3f] %vm1442, %v1417
        %1477 = vst.msk [vmem:[%s1470 + $0x30] sm:$0xff] %vm1440, %v1418
        %1478 = vst.msk [vmem:[%s1470 + $0x38] sm:$0x3f] %vm1442, %v1419
        %1479 = vst.msk [vmem:[%s1470 + $0x40] sm:$0xff] %vm1440, %v1420
        %1480 = vst.msk [vmem:[%s1470 + $0x48] sm:$0x3f] %vm1442, %v1421
        %1481 = vst.msk [vmem:[%s1470 + $0x50] sm:$0xff] %vm1440, %v1422
        %1482 = vst.msk [vmem:[%s1470 + $0x58] sm:$0x3f] %vm1442, %v1423
        %1483 = vst.msk [vmem:[%s1470 + $0x60] sm:$0xff] %vm1440, %v1424
        %1484 = vst.msk [vmem:[%s1470 + $0x68] sm:$0x3f] %vm1442, %v1425
        %1485 = vst.msk [vmem:[%s1470 + $0x70] sm:$0xff] %vm1440, %v1426
        %1486 = vst.msk [vmem:[%s1470 + $0x78] sm:$0x3f] %vm1442, %v1427
        %1487 = vst.msk [vmem:[%s1470 + $0x80] sm:$0xff] %vm1440, %v1428
        %1488 = vst.msk [vmem:[%s1470 + $0x88] sm:$0x3f] %vm1442, %v1429
        %1489 = vst.msk [vmem:[%s1470 + $0x90] sm:$0xff] %vm1440, %v1430
        %1490 = vst.msk [vmem:[%s1470 + $0x98] sm:$0x3f] %vm1442, %v1431
        %1491 = vst.msk [vmem:[%s1470 + $0xa0] sm:$0xff] %vm1440, %v1432
        %1492 = vst.msk [vmem:[%s1470 + $0xa8] sm:$0x3f] %vm1442, %v1433
        %1493 = vst.msk [vmem:[%s1470 + $0xb0] sm:$0xff] %vm1440, %v1434
        %1494 = vst.msk [vmem:[%s1470 + $0xb8] sm:$0x3f] %vm1442, %v1435
        %1495 = vst.msk [vmem:[%s1470 + $0xc0] sm:$0xff] %vm1440, %v1436
        %1496 = vst.msk [vmem:[%s1470 + $0xc8] sm:$0x3f] %vm1442, %v1437
        %1497 = vst.msk [vmem:[%s1470 + $0xd0] sm:$0xff] %vm1440, %v1438
        %1498 = vst.msk [vmem:[%s1470 + $0xd8] sm:$0x3f] %vm1442, %v1439
        %s1499 = smul.u32 2, %s19
        %p1500 = scmp.lt.s32.totalorder %s1499, 3
        %s1501 = scalar_select %p1500, %s1499, 3
        %p1502 = scmp.lt.s32.totalorder %s18, 0
        %s1503 = scalar_select %p1502, %s18, 0
        %s1504 = smul.addr %s1501, 28
        %s1505 = sadd.s32 %s1503, %s1504
        %s1506 = smul.addr %s1505, 8
        %s1507 = scalar_lea.vmem %s2, %s1506
        // Predicated region
        $region33: #{tpu_custom_call.1} parent=27 // pred_check
          %p1508 = pneg %p93
        $region34: #{tpu_custom_call.1} parent=27 // pred_check_branch
          %1510 = sbr.rel (%p1508) target = $region36
        $region35: #{tpu_custom_call.1} parent=27 // pred_region
          %s1511 = smul.u32 2, %s19
        $region36: #{tpu_custom_call.1} parent=27 // pred_fallthru
          _
      $region28: #{tpu_custom_call.1} parent=5 // pred_fallthru
        _
      %p1512 = scmp.le.s32.totalorder 2, %s9
      // Predicated region
      $region37: #{tpu_custom_call.1} parent=5 // pred_check
        %p1513 = pneg %p1512
      $region38: #{tpu_custom_call.1} parent=5 // pred_check_branch
        %1515 = sbr.rel (%p1513) target = $region40
      $region39: #{tpu_custom_call.1} parent=5 // pred_region
        %s1516 = ssub.s32 %s9, 2
        // Predicated region
        $region41: #{tpu_custom_call.1} parent=39 // pred_check
          %p1517 = pneg %p99
        $region42: #{tpu_custom_call.1} parent=39 // pred_check_branch
          %1519 = sbr.rel (%p1517) target = $region44
        $region43: #{tpu_custom_call.1} parent=39 // pred_region
          %s1520 = smul.u32 2, %s21
          %p1521 = scmp.lt.s32.totalorder %s1520, 3
          %s1522 = scalar_select %p1521, %s1520, 3
          %p1523 = scmp.lt.s32.totalorder %s20, 0
          %s1524 = scalar_select %p1523, %s20, 0
          %s1525 = smul.addr %s1522, 28
          %s1526 = sadd.s32 %s1524, %s1525
          %s1527 = smul.addr %s1526, 8
          %s1528 = scalar_lea.vmem %s2, %s1527
        $region44: #{tpu_custom_call.1} parent=39 // pred_fallthru
          _
      $region40: #{tpu_custom_call.1} parent=5 // pred_fallthru
        _
    $region6: #{tpu_custom_call.1} parent=1 // loop_footer
      %s13 = sadd.s32 1, %s9
    $region7: #{tpu_custom_call.1} parent=1 // loop_footer_branch
      %8 = sbr.rel target = $region3
    $region8: #{tpu_custom_call.1} parent=1 // loop_exit
      _
    %1529 = vsyncpa [#allocation3], 1
    %s1530 = scalar_lea.sflag [#allocation3], 1
    %1531 = vsyncpa %s1530, 1

</llo_original>
